<compile_context>
chip_gen: v6e
topology: v6e:2x2x1
jax: 0.10.0
libtpu: 0.0.40
codegen_flags: <defaults>
</compile_context>

<pallas_src>
import math
from functools import partial

import jax
import jax.numpy as jnp
from jax.experimental import pallas as pl
from jax.experimental.pallas import tpu as pltpu


# ----------------------------- Fused Pallas kernel -----------------------------

def _fused_mha_kernel(x_ref, w_in_ref, w_fused_ref, b_proj_ref, o_ref,
                      *, num_heads, head_dim, scale, compute_dtype, approx_recip):
    T, E = x_ref.shape
    H, Dh = num_heads, head_dim

    def cast(t):
        return t.astype(compute_dtype)   # no-op when dtypes already match

    x = cast(x_ref[...])                                                    # (T, E)
    w_in = cast(w_in_ref[...])                                              # (E, 3E)
    w_fused = cast(w_fused_ref[...])                                        # (E, E)

    # Fused QKV projection (no bias; weight pre-transposed to (E, 3E)).
    qkv = jax.lax.dot_general(x, w_in, (((1,), (0,)), ((), ())),
                              preferred_element_type=jnp.float32)           # (T, 3E) f32
    q = qkv[:, :E] * scale            # pre-scale q: (T,Dh)-sized mults, not (T,T)
    k = qkv[:, E:2 * E]
    v = qkv[:, 2 * E:]

    # Additive causal mask (== torch.triu(ones, diagonal=1)), built ONCE, reused per head.
    row = jax.lax.broadcasted_iota(jnp.int32, (T, T), 0)
    col = jax.lax.broadcasted_iota(jnp.int32, (T, T), 1)
    neg_mask = jnp.where(col > row, jnp.float32(-1e30), jnp.float32(0.0))   # (T, T) f32

    # Per-head attention; heads accumulate straight into the fused (out_proj ∘ proj)
    # output — no lane concat needed:
    #   concat_h(o_h) @ W_fused_T == sum_h o_h @ W_fused_T[h*Dh:(h+1)*Dh, :]
    acc = jnp.zeros((T, E), jnp.float32)
    for h in range(H):
        sl = slice(h * Dh, (h + 1) * Dh)
        qh, kh, vh = q[:, sl], k[:, sl], v[:, sl]

        # q @ k^T via dot_general contracting the last dims (no explicit transpose).
        s = jax.lax.dot_general(cast(qh), cast(kh), (((1,), (1,)), ((), ())),
                                preferred_element_type=jnp.float32)         # (T, T) f32
        s = s + neg_mask

        m = jnp.max(s, axis=-1, keepdims=True)
        p = jnp.exp(s - m)
        l = jnp.sum(p, axis=-1, keepdims=True)

        # Deferred normalization: scale the (T, Dh) result, not the (T, T) probabilities.
        oh = jax.lax.dot_general(cast(p), cast(vh), (((1,), (0,)), ((), ())),
                                 preferred_element_type=jnp.float32)        # (T, Dh)
        oh = oh * pl.reciprocal(l, approx=approx_recip)                     # EUP slot

        acc = acc + jax.lax.dot_general(cast(oh), w_fused[sl, :],
                                        (((1,), (0,)), ((), ())),
                                        preferred_element_type=jnp.float32)

    # Single bias add (proj.bias) at the end.
    o_ref[...] = (acc + b_proj_ref[...]).astype(o_ref.dtype)


# ----------------------------- Parameter preparation -----------------------------

def prepare_params(params, *, param_dtype=jnp.float32):
    """One-time layout prep, hoisted out of the forward:
       * fuse proj and out_proj:  W_fused_T = (W_proj @ W_out).T   (exact)
       * transpose weights to (K, N) so the kernel never transposes
       * optionally store weights in bf16 (halves DMA bytes / VMEM residency)
       * bias stored as an f32 (1, E) row (added to the f32 accumulator)
    """
    w_in = jnp.asarray(params["w_in"], jnp.float32)        # (3E, E)  in_proj_weight
    w_out = jnp.asarray(params["w_out"], jnp.float32)      # (E, E)   out_proj.weight
    w_proj = jnp.asarray(params["w_proj"], jnp.float32)    # (E, E)   proj.weight
    b_proj = jnp.asarray(params["b_proj"], jnp.float32)    # (E,)     proj.bias
    w_fused_t = (w_proj @ w_out).T                          # (E, E)
    return dict(
        w_in_t=w_in.T.astype(param_dtype),                  # (E, 3E)
        w_fused_t=w_fused_t.astype(param_dtype),             # (E, E)
        b_proj=b_proj.reshape(1, -1),                         # (1, E) f32
    )


# ----------------------------- Wrapper -----------------------------

def mha_forward(x, prepared, num_heads, context_length, *,
                compute_dtype=None, approx_recip=True, vmem_limit_bytes=None):
    """x: (B, T, E) with T <= context_length (the branch the module actually exercises)."""
    B, T, E = x.shape
    assert T <= context_length, "only the context_length >= num_tokens branch is reproduced"
    assert E % num_heads == 0
    Dh = E // num_heads

    if compute_dtype is None:
        compute_dtype = prepared["w_in_t"].dtype   # match weight storage dtype

    kernel = partial(_fused_mha_kernel, num_heads=num_heads, head_dim=Dh,
                     scale=1.0 / math.sqrt(Dh), compute_dtype=compute_dtype,
                     approx_recip=approx_recip)

    return pl.pallas_call(
        kernel,
        out_shape=jax.ShapeDtypeStruct((B, T, E), x.dtype),
        grid=(B,),
        in_specs=[
            pl.BlockSpec((None, T, E), lambda b: (b, 0, 0)),   # x block per batch
            pl.BlockSpec((E, 3 * E), lambda b: (0, 0)),        # w_in  (resident)
            pl.BlockSpec((E, E), lambda b: (0, 0)),            # W_fused_T (resident)
            pl.BlockSpec((1, E), lambda b: (0, 0)),            # proj bias
        ],
        out_specs=pl.BlockSpec((None, T, E), lambda b: (b, 0, 0)),   # lane-dense (T, E)
        compiler_params=pltpu.CompilerParams(
            dimension_semantics=("parallel",),        # batch axis shards across TCs
            vmem_limit_bytes=vmem_limit_bytes,        # raise for production sizes
        ),
    )(x, prepared["w_in_t"], prepared["w_fused_t"], prepared["b_proj"])


# ----------------------------- Params & pure-JAX reference -----------------------------

def init_params(key, d_out):
    """Deterministic synthetic parameters in PyTorch layout (shapes match the module)."""
    k1, k2, k3, k4 = jax.random.split(key, 4)
    s = 0.05
    return dict(
        w_in=jax.random.normal(k1, (3 * d_out, d_out), jnp.float32) * s,   # in_proj_weight
        w_out=jax.random.normal(k2, (d_out, d_out), jnp.float32) * s,      # out_proj.weight
        w_proj=jax.random.normal(k3, (d_out, d_out), jnp.float32) * s,     # proj.weight
        b_proj=jax.random.normal(k4, (d_out,), jnp.float32) * s,           # proj.bias
    )


def mha_reference(x, params, num_heads):
    B, T, E = x.shape
    H, Dh = num_heads, E // num_heads
    qkv = x @ params["w_in"].T
    q, k, v = jnp.split(qkv, 3, axis=-1)
    q = q.reshape(B, T, H, Dh).transpose(0, 2, 1, 3)
    k = k.reshape(B, T, H, Dh).transpose(0, 2, 1, 3)
    v = v.reshape(B, T, H, Dh).transpose(0, 2, 1, 3)
    s = jnp.einsum("bhqd,bhkd->bhqk", q, k) / math.sqrt(Dh)
    mask = jnp.triu(jnp.ones((T, T), bool), 1)
    s = jnp.where(mask, -jnp.inf, s)
    p = jax.nn.softmax(s, axis=-1)
    o = jnp.einsum("bhqk,bhkd->bhqd", p, v)
    o = o.transpose(0, 2, 1, 3).reshape(B, T, E)
    o = o @ params["w_out"].T
    return o @ params["w_proj"].T + params["b_proj"]


# ----------------------------- Main -----------------------------

if __name__ == "__main__":
    # d_in == d_out == 32, num_heads = 4, context_length = 16, batch = 2, seq = 8
    B, T, d_out, num_heads, context_length = 2, 8, 32, 4, 16

    key = jax.random.PRNGKey(0)
    kx, kp = jax.random.split(key)
    x = jax.random.normal(kx, (B, T, d_out), jnp.float32)
    params = init_params(kp, d_out)
    ref = mha_reference(x, params, num_heads)

    # --- f32 weights, exact reciprocal: tight correctness check ---
    prep_f32 = prepare_params(params, param_dtype=jnp.float32)
    out_f32 = jax.block_until_ready(
        mha_forward(x, prep_f32, num_heads, context_length, approx_recip=False))
    assert out_f32.shape == (B, T, d_out)
    if not jnp.allclose(out_f32, ref, atol=2e-3, rtol=2e-3):
        raise AssertionError("f32 Pallas output does not match JAX reference")

    # --- bf16 weight storage + bf16 MXU operands (production path on v5e/v6e/v7x),
    #     f32 accumulation & softmax, approx reciprocal: loose-tolerance check ---
    prep_bf16 = prepare_params(params, param_dtype=jnp.bfloat16)
    out_bf16 = jax.block_until_ready(
        mha_forward(x, prep_bf16, num_heads, context_length,
                    compute_dtype=jnp.bfloat16, approx_recip=True))
    if not jnp.allclose(out_bf16.astype(jnp.float32), ref, atol=5e-2, rtol=5e-2):
        raise AssertionError("bf16 Pallas output does not match JAX reference")

    print("KERNEL_OK")
</pallas_src>

<mosaic_0001>
module attributes {stable_mosaic.version = 11 : i64} {
  func.func @_fused_mha_kernel(%arg0: i32, %arg1: memref<1x8x32xf32, #tpu.memory_space<vmem>>, %arg2: memref<32x96xf32, #tpu.memory_space<vmem>>, %arg3: memref<32x32xf32, #tpu.memory_space<vmem>>, %arg4: memref<1x32xf32, #tpu.memory_space<vmem>>, %arg5: memref<1x8x32xf32, #tpu.memory_space<vmem>>) attributes {dimension_semantics = [#tpu.dimension_semantics<parallel>], iteration_bounds = array<i64: 2>, scalar_prefetch = 0 : i64, scratch_operands = 0 : i64, tpu.core_type = #tpu.core_type<tc>, window_params = [{transform_indices = @transform_0, window_bounds = array<i64: 1, 8, 32>}, {pipeline_mode = #tpu.pipeline_mode<synchronous>, transform_indices = @transform_1, window_bounds = array<i64: 32, 96>}, {pipeline_mode = #tpu.pipeline_mode<synchronous>, transform_indices = @transform_2, window_bounds = array<i64: 32, 32>}, {pipeline_mode = #tpu.pipeline_mode<synchronous>, transform_indices = @transform_3, window_bounds = array<i64: 1, 32>}, {transform_indices = @transform_4, window_bounds = array<i64: 1, 8, 32>}]} {
    %c0 = arith.constant 0 : index
    %c0_0 = arith.constant 0 : index
    %c0_1 = arith.constant 0 : index
    %0 = vector.load %arg1[%c0, %c0_0, %c0_1] : memref<1x8x32xf32, #tpu.memory_space<vmem>>, vector<1x8x32xf32>
    %1 = vector.shape_cast %0 : vector<1x8x32xf32> to vector<8x32xf32>
    %c0_2 = arith.constant 0 : index
    %c0_3 = arith.constant 0 : index
    %2 = vector.load %arg2[%c0_2, %c0_3] : memref<32x96xf32, #tpu.memory_space<vmem>>, vector<32x96xf32>
    %c0_4 = arith.constant 0 : index
    %c0_5 = arith.constant 0 : index
    %3 = vector.load %arg3[%c0_4, %c0_5] : memref<32x32xf32, #tpu.memory_space<vmem>>, vector<32x32xf32>
    %cst = arith.constant dense<0.000000e+00> : vector<8x96xf32>
    %4 = tpu.matmul %1, %2, %cst {dimension_numbers = #tpu.dot_dimension_numbers<[1], [0], [0], [1], [0, 0, 1, 1], [], []>} : vector<8x32xf32>, vector<32x96xf32>, vector<8x96xf32> -> vector<8x96xf32>
    %5 = vector.extract_strided_slice %4 {offsets = [0, 0], sizes = [8, 32], strides = [1, 1]} : vector<8x96xf32> to vector<8x32xf32>
    %cst_6 = arith.constant 0.353553385 : f32
    %6 = vector.broadcast %cst_6 : f32 to vector<8x32xf32>
    %7 = arith.mulf %5, %6 : vector<8x32xf32>
    %8 = vector.extract_strided_slice %4 {offsets = [0, 32], sizes = [8, 32], strides = [1, 1]} : vector<8x96xf32> to vector<8x32xf32>
    %9 = vector.extract_strided_slice %4 {offsets = [0, 64], sizes = [8, 32], strides = [1, 1]} : vector<8x96xf32> to vector<8x32xf32>
    %10 = tpu.iota {dimensions = array<i32: 0>} : vector<8x8xi32>
    %11 = tpu.iota {dimensions = array<i32: 1>} : vector<8x8xi32>
    %12 = arith.cmpi sgt, %11, %10 : vector<8x8xi32>
    %cst_7 = arith.constant -1.000000e+30 : f32
    %cst_8 = arith.constant 0.000000e+00 : f32
    %13 = vector.broadcast %cst_7 : f32 to vector<8x8xf32>
    %14 = vector.broadcast %cst_8 : f32 to vector<8x8xf32>
    %15 = arith.select %12, %13, %14 : vector<8x8xi1>, vector<8x8xf32>
    %cst_9 = arith.constant 0.000000e+00 : f32
    %16 = vector.broadcast %cst_9 : f32 to vector<8x32xf32>
    %17 = vector.extract_strided_slice %7 {offsets = [0, 0], sizes = [8, 8], strides = [1, 1]} : vector<8x32xf32> to vector<8x8xf32>
    %18 = vector.extract_strided_slice %8 {offsets = [0, 0], sizes = [8, 8], strides = [1, 1]} : vector<8x32xf32> to vector<8x8xf32>
    %19 = vector.extract_strided_slice %9 {offsets = [0, 0], sizes = [8, 8], strides = [1, 1]} : vector<8x32xf32> to vector<8x8xf32>
    %cst_10 = arith.constant dense<0.000000e+00> : vector<8x8xf32>
    %20 = tpu.matmul %17, %18, %cst_10 {dimension_numbers = #tpu.dot_dimension_numbers<[1], [1], [0], [0], [0, 0, 1, 0], [], []>} : vector<8x8xf32>, vector<8x8xf32>, vector<8x8xf32> -> vector<8x8xf32>
    %21 = arith.addf %20, %15 : vector<8x8xf32>
    %cst_11 = arith.constant dense<0xFF800000> : vector<8xf32>
    %22 = vector.multi_reduction <maximumf>, %21, %cst_11 [1] : vector<8x8xf32> to vector<8xf32>
    %23 = vector.shape_cast %22 : vector<8xf32> to vector<8x1xf32>
    %24 = vector.broadcast %23 : vector<8x1xf32> to vector<8x8xf32>
    %25 = arith.subf %21, %24 : vector<8x8xf32>
    %26 = math.exp %25 : vector<8x8xf32>
    %cst_12 = arith.constant dense<0.000000e+00> : vector<8xf32>
    %27 = vector.multi_reduction <add>, %26, %cst_12 [1] : vector<8x8xf32> to vector<8xf32>
    %28 = vector.shape_cast %27 : vector<8xf32> to vector<8x1xf32>
    %cst_13 = arith.constant dense<0.000000e+00> : vector<8x8xf32>
    %29 = tpu.matmul %26, %19, %cst_13 {dimension_numbers = #tpu.dot_dimension_numbers<[1], [0], [0], [1], [0, 0, 1, 1], [], []>} : vector<8x8xf32>, vector<8x8xf32>, vector<8x8xf32> -> vector<8x8xf32>
    %30 = tpu.reciprocal %28 : vector<8x1xf32> -> vector<8x1xf32>
    %31 = vector.broadcast %30 : vector<8x1xf32> to vector<8x8xf32>
    %32 = arith.mulf %29, %31 : vector<8x8xf32>
    %33 = vector.extract_strided_slice %3 {offsets = [0, 0], sizes = [8, 32], strides = [1, 1]} : vector<32x32xf32> to vector<8x32xf32>
    %cst_14 = arith.constant dense<0.000000e+00> : vector<8x32xf32>
    %34 = tpu.matmul %32, %33, %cst_14 {dimension_numbers = #tpu.dot_dimension_numbers<[1], [0], [0], [1], [0, 0, 1, 1], [], []>} : vector<8x8xf32>, vector<8x32xf32>, vector<8x32xf32> -> vector<8x32xf32>
    %35 = arith.addf %16, %34 : vector<8x32xf32>
    %36 = vector.extract_strided_slice %7 {offsets = [0, 8], sizes = [8, 8], strides = [1, 1]} : vector<8x32xf32> to vector<8x8xf32>
    %37 = vector.extract_strided_slice %8 {offsets = [0, 8], sizes = [8, 8], strides = [1, 1]} : vector<8x32xf32> to vector<8x8xf32>
    %38 = vector.extract_strided_slice %9 {offsets = [0, 8], sizes = [8, 8], strides = [1, 1]} : vector<8x32xf32> to vector<8x8xf32>
    %cst_15 = arith.constant dense<0.000000e+00> : vector<8x8xf32>
    %39 = tpu.matmul %36, %37, %cst_15 {dimension_numbers = #tpu.dot_dimension_numbers<[1], [1], [0], [0], [0, 0, 1, 0], [], []>} : vector<8x8xf32>, vector<8x8xf32>, vector<8x8xf32> -> vector<8x8xf32>
    %40 = arith.addf %39, %15 : vector<8x8xf32>
    %cst_16 = arith.constant dense<0xFF800000> : vector<8xf32>
    %41 = vector.multi_reduction <maximumf>, %40, %cst_16 [1] : vector<8x8xf32> to vector<8xf32>
    %42 = vector.shape_cast %41 : vector<8xf32> to vector<8x1xf32>
    %43 = vector.broadcast %42 : vector<8x1xf32> to vector<8x8xf32>
    %44 = arith.subf %40, %43 : vector<8x8xf32>
    %45 = math.exp %44 : vector<8x8xf32>
    %cst_17 = arith.constant dense<0.000000e+00> : vector<8xf32>
    %46 = vector.multi_reduction <add>, %45, %cst_17 [1] : vector<8x8xf32> to vector<8xf32>
    %47 = vector.shape_cast %46 : vector<8xf32> to vector<8x1xf32>
    %cst_18 = arith.constant dense<0.000000e+00> : vector<8x8xf32>
    %48 = tpu.matmul %45, %38, %cst_18 {dimension_numbers = #tpu.dot_dimension_numbers<[1], [0], [0], [1], [0, 0, 1, 1], [], []>} : vector<8x8xf32>, vector<8x8xf32>, vector<8x8xf32> -> vector<8x8xf32>
    %49 = tpu.reciprocal %47 : vector<8x1xf32> -> vector<8x1xf32>
    %50 = vector.broadcast %49 : vector<8x1xf32> to vector<8x8xf32>
    %51 = arith.mulf %48, %50 : vector<8x8xf32>
    %52 = vector.extract_strided_slice %3 {offsets = [8, 0], sizes = [8, 32], strides = [1, 1]} : vector<32x32xf32> to vector<8x32xf32>
    %cst_19 = arith.constant dense<0.000000e+00> : vector<8x32xf32>
    %53 = tpu.matmul %51, %52, %cst_19 {dimension_numbers = #tpu.dot_dimension_numbers<[1], [0], [0], [1], [0, 0, 1, 1], [], []>} : vector<8x8xf32>, vector<8x32xf32>, vector<8x32xf32> -> vector<8x32xf32>
    %54 = arith.addf %35, %53 : vector<8x32xf32>
    %55 = vector.extract_strided_slice %7 {offsets = [0, 16], sizes = [8, 8], strides = [1, 1]} : vector<8x32xf32> to vector<8x8xf32>
    %56 = vector.extract_strided_slice %8 {offsets = [0, 16], sizes = [8, 8], strides = [1, 1]} : vector<8x32xf32> to vector<8x8xf32>
    %57 = vector.extract_strided_slice %9 {offsets = [0, 16], sizes = [8, 8], strides = [1, 1]} : vector<8x32xf32> to vector<8x8xf32>
    %cst_20 = arith.constant dense<0.000000e+00> : vector<8x8xf32>
    %58 = tpu.matmul %55, %56, %cst_20 {dimension_numbers = #tpu.dot_dimension_numbers<[1], [1], [0], [0], [0, 0, 1, 0], [], []>} : vector<8x8xf32>, vector<8x8xf32>, vector<8x8xf32> -> vector<8x8xf32>
    %59 = arith.addf %58, %15 : vector<8x8xf32>
    %cst_21 = arith.constant dense<0xFF800000> : vector<8xf32>
    %60 = vector.multi_reduction <maximumf>, %59, %cst_21 [1] : vector<8x8xf32> to vector<8xf32>
    %61 = vector.shape_cast %60 : vector<8xf32> to vector<8x1xf32>
    %62 = vector.broadcast %61 : vector<8x1xf32> to vector<8x8xf32>
    %63 = arith.subf %59, %62 : vector<8x8xf32>
    %64 = math.exp %63 : vector<8x8xf32>
    %cst_22 = arith.constant dense<0.000000e+00> : vector<8xf32>
    %65 = vector.multi_reduction <add>, %64, %cst_22 [1] : vector<8x8xf32> to vector<8xf32>
    %66 = vector.shape_cast %65 : vector<8xf32> to vector<8x1xf32>
    %cst_23 = arith.constant dense<0.000000e+00> : vector<8x8xf32>
    %67 = tpu.matmul %64, %57, %cst_23 {dimension_numbers = #tpu.dot_dimension_numbers<[1], [0], [0], [1], [0, 0, 1, 1], [], []>} : vector<8x8xf32>, vector<8x8xf32>, vector<8x8xf32> -> vector<8x8xf32>
    %68 = tpu.reciprocal %66 : vector<8x1xf32> -> vector<8x1xf32>
    %69 = vector.broadcast %68 : vector<8x1xf32> to vector<8x8xf32>
    %70 = arith.mulf %67, %69 : vector<8x8xf32>
    %71 = vector.extract_strided_slice %3 {offsets = [16, 0], sizes = [8, 32], strides = [1, 1]} : vector<32x32xf32> to vector<8x32xf32>
    %cst_24 = arith.constant dense<0.000000e+00> : vector<8x32xf32>
    %72 = tpu.matmul %70, %71, %cst_24 {dimension_numbers = #tpu.dot_dimension_numbers<[1], [0], [0], [1], [0, 0, 1, 1], [], []>} : vector<8x8xf32>, vector<8x32xf32>, vector<8x32xf32> -> vector<8x32xf32>
    %73 = arith.addf %54, %72 : vector<8x32xf32>
    %74 = vector.extract_strided_slice %7 {offsets = [0, 24], sizes = [8, 8], strides = [1, 1]} : vector<8x32xf32> to vector<8x8xf32>
    %75 = vector.extract_strided_slice %8 {offsets = [0, 24], sizes = [8, 8], strides = [1, 1]} : vector<8x32xf32> to vector<8x8xf32>
    %76 = vector.extract_strided_slice %9 {offsets = [0, 24], sizes = [8, 8], strides = [1, 1]} : vector<8x32xf32> to vector<8x8xf32>
    %cst_25 = arith.constant dense<0.000000e+00> : vector<8x8xf32>
    %77 = tpu.matmul %74, %75, %cst_25 {dimension_numbers = #tpu.dot_dimension_numbers<[1], [1], [0], [0], [0, 0, 1, 0], [], []>} : vector<8x8xf32>, vector<8x8xf32>, vector<8x8xf32> -> vector<8x8xf32>
    %78 = arith.addf %77, %15 : vector<8x8xf32>
    %cst_26 = arith.constant dense<0xFF800000> : vector<8xf32>
    %79 = vector.multi_reduction <maximumf>, %78, %cst_26 [1] : vector<8x8xf32> to vector<8xf32>
    %80 = vector.shape_cast %79 : vector<8xf32> to vector<8x1xf32>
    %81 = vector.broadcast %80 : vector<8x1xf32> to vector<8x8xf32>
    %82 = arith.subf %78, %81 : vector<8x8xf32>
    %83 = math.exp %82 : vector<8x8xf32>
    %cst_27 = arith.constant dense<0.000000e+00> : vector<8xf32>
    %84 = vector.multi_reduction <add>, %83, %cst_27 [1] : vector<8x8xf32> to vector<8xf32>
    %85 = vector.shape_cast %84 : vector<8xf32> to vector<8x1xf32>
    %cst_28 = arith.constant dense<0.000000e+00> : vector<8x8xf32>
    %86 = tpu.matmul %83, %76, %cst_28 {dimension_numbers = #tpu.dot_dimension_numbers<[1], [0], [0], [1], [0, 0, 1, 1], [], []>} : vector<8x8xf32>, vector<8x8xf32>, vector<8x8xf32> -> vector<8x8xf32>
    %87 = tpu.reciprocal %85 : vector<8x1xf32> -> vector<8x1xf32>
    %88 = vector.broadcast %87 : vector<8x1xf32> to vector<8x8xf32>
    %89 = arith.mulf %86, %88 : vector<8x8xf32>
    %90 = vector.extract_strided_slice %3 {offsets = [24, 0], sizes = [8, 32], strides = [1, 1]} : vector<32x32xf32> to vector<8x32xf32>
    %cst_29 = arith.constant dense<0.000000e+00> : vector<8x32xf32>
    %91 = tpu.matmul %89, %90, %cst_29 {dimension_numbers = #tpu.dot_dimension_numbers<[1], [0], [0], [1], [0, 0, 1, 1], [], []>} : vector<8x8xf32>, vector<8x32xf32>, vector<8x32xf32> -> vector<8x32xf32>
    %92 = arith.addf %73, %91 : vector<8x32xf32>
    %c0_30 = arith.constant 0 : index
    %c0_31 = arith.constant 0 : index
    %93 = vector.load %arg4[%c0_30, %c0_31] : memref<1x32xf32, #tpu.memory_space<vmem>>, vector<1x32xf32>
    %94 = vector.broadcast %93 : vector<1x32xf32> to vector<8x32xf32>
    %95 = arith.addf %92, %94 : vector<8x32xf32>
    %c0_32 = arith.constant 0 : index
    %c0_33 = arith.constant 0 : index
    %c0_34 = arith.constant 0 : index
    %96 = vector.load %arg5[%c0_32, %c0_33, %c0_34] : memref<1x8x32xf32, #tpu.memory_space<vmem>>, vector<1x8x32xf32>
    %97 = vector.shape_cast %96 : vector<1x8x32xf32> to vector<8x32xf32>
    %98 = vector.shape_cast %95 : vector<8x32xf32> to vector<1x8x32xf32>
    tpu.vector_store %arg5[%c0_32, %c0_33, %c0_34], %98 {strides = array<i32>} : memref<1x8x32xf32, #tpu.memory_space<vmem>>, vector<1x8x32xf32>,
    return
  }
  func.func @transform_0(%arg0: i32) -> (i32, i32, i32) {
    %c0_i32 = arith.constant 0 : i32
    %c0_i32_0 = arith.constant 0 : i32
    %c0_i32_1 = arith.constant 0 : i32
    return %arg0, %c0_i32, %c0_i32_0 : i32, i32, i32
  }
  func.func @transform_1(%arg0: i32) -> (i32, i32) {
    %c0_i32 = arith.constant 0 : i32
    %c0_i32_0 = arith.constant 0 : i32
    %c0_i32_1 = arith.constant 0 : i32
    return %c0_i32, %c0_i32_0 : i32, i32
  }
  func.func @transform_2(%arg0: i32) -> (i32, i32) {
    %c0_i32 = arith.constant 0 : i32
    %c0_i32_0 = arith.constant 0 : i32
    %c0_i32_1 = arith.constant 0 : i32
    return %c0_i32, %c0_i32_0 : i32, i32
  }
  func.func @transform_3(%arg0: i32) -> (i32, i32) {
    %c0_i32 = arith.constant 0 : i32
    %c0_i32_0 = arith.constant 0 : i32
    %c0_i32_1 = arith.constant 0 : i32
    return %c0_i32, %c0_i32_0 : i32, i32
  }
  func.func @transform_4(%arg0: i32) -> (i32, i32, i32) {
    %c0_i32 = arith.constant 0 : i32
    %c0_i32_0 = arith.constant 0 : i32
    %c0_i32_1 = arith.constant 0 : i32
    return %arg0, %c0_i32, %c0_i32_0 : i32, i32, i32
  }
}

</mosaic_0001>

<llo_original>
// kernel: tpu_custom_call.1
$region0: #{tpu_custom_call.1}
  #allocation0 [shape = 'u32[]', space=smem, size = 0x4, offset = 0x4, fixed_abs, tag = 'smem constant byte address 0x4 - core index']
  #allocation1 [shape = 'u32[144,128]{1,0:T(1,128)}', space=vmem, size = 0x12000, scoped, tag = 'internal scratch']
  %s0 = inlined_call_operand.hbm [shape: f32[2,8,32], index: 0, kind: input, shape index: {}]
  %s1 = inlined_call_operand.hbm [shape: f32[32,96], index: 1, kind: input, shape index: {}]
  %s2 = inlined_call_operand.hbm [shape: f32[32,32], index: 2, kind: input, shape index: {}]
  %s3 = inlined_call_operand.vmem [shape: f32[1,32], index: 3, kind: input, shape index: {}]
  %s4 = inlined_call_operand.hbm [shape: f32[2,8,32], index: 4, kind: output, shape index: {}]
  %s5 = sld [smem:[#allocation0]]
  $region61: #{tpu_custom_call.1} parent=0
    _
  %s7 = ssub.s32 1, %s5
  %s8 = scalar_select 0, %s7, %s5
  $region1: #{tpu_custom_call.1} parent=0
    #allocation2 [shape = 'u8[8192]{0}', space=vmem, size = 0x2000, scoped, tag = 'input window, operand 0']
    #allocation3 [shape = 's32[2]{0}', space=sflag, size = 0x8, scoped, tag = 'scoped memory for tpu_custom_call.1']
    #allocation4 [shape = 's32[2]{0}', space=sflag, size = 0x8, scoped, tag = 'scoped memory for tpu_custom_call.1']
    #allocation5 [shape = 'u8[16384]{0}', space=vmem, size = 0x4000, scoped, tag = 'input window, operand 1, single buffered']
    #allocation6 [shape = 's32[1]{0}', space=sflag, size = 0x4, scoped, tag = 'scoped memory for tpu_custom_call.1']
    #allocation7 [shape = 'u8[16384]{0}', space=vmem, size = 0x4000, scoped, tag = 'input window, operand 2, single buffered']
    #allocation8 [shape = 'u8[8192]{0}', space=vmem, size = 0x2000, scoped, tag = 'output window, operand 0']
    %9 = vsyncpa [#allocation3], 0
    %s10 = scalar_lea.sflag [#allocation3], 1
    %11 = vsyncpa %s10, 0
    %12 = vsyncpa [#allocation6], 0
    %13 = vsyncpa [#allocation4], 0
    %s14 = scalar_lea.sflag [#allocation4], 1
    %15 = vsyncpa %s14, 0
    loop: start=0, step=1, limit=4
    $region2: #{tpu_custom_call.1} parent=1 // loop_pre_header
      _
    $region3: #{tpu_custom_call.1} parent=1 // loop_header
      %s17 = sphi 0, %s21
      %p18 = scmp.ge.s32.totalorder %s17, 4
      %s27 = sphi 0, %s29
      %s30 = sphi 0, %s27
      %s31 = sphi 0, %s30
      %s47 = sphi 0, %s31
      %s51 = sphi 0, %s51
      %s53 = sphi 0, %s51
      %s54 = sphi 0, %s53
      %s68 = sphi 0, %s54
      %s72 = sphi 0, %s72
      %s74 = sphi 0, %s72
      %s75 = sphi 0, %s74
      %s89 = sphi 0, %s75
      %s93 = sphi 0, %s93
      %s95 = sphi 0, %s93
      %s96 = sphi 0, %s95
      %s110 = sphi 0, %s96
      %s116 = sphi 0, %s118
      %s119 = sphi 0, %s116
      %s120 = sphi 0, %s119
      %s136 = sphi 0, %s120
    $region4: #{tpu_custom_call.1} parent=1 // loop_header_branch
      %20 = sbr.rel (%p18) target = $region8
    $region5: #{tpu_custom_call.1} parent=1 // loop_body
      %s22 = ssub.s32 %s17, 1
      %s23 = ssub.s32 %s17, 2
      %s24 = sadd.s32 %s17, 1
      %s25 = ssub.s32 %s17, %s24
      %p26 = scmp.eq.s32.totalorder %s25, 0
      %s28 = sadd.s32 %s27, 1
      %s29 = scalar_select %p26, %s27, %s28
      %p32 = pneg %p26
      %p33 = scmp.eq.s32.totalorder %s17, 1
      %p34 = por %p32, %p33
      %p35 = scmp.ne.s32.totalorder %s27, %s30
      %p36 = scmp.eq.s32.totalorder %s17, 0
      %p37 = por %p35, %p36
      %p38 = scmp.ne.s32.totalorder %s27, %s30
      %p39 = scmp.eq.s32.totalorder %s22, 1
      %p40 = por %p38, %p39
      %p41 = scmp.ne.s32.totalorder %s30, %s31
      %p42 = scmp.eq.s32.totalorder %s22, 0
      %p43 = por %p41, %p42
      %p44 = scmp.ne.s32.totalorder %s30, %s31
      %p45 = scmp.eq.s32.totalorder %s23, 1
      %p46 = por %p44, %p45
      %p48 = scmp.ne.s32.totalorder %s31, %s47
      %p49 = scmp.eq.s32.totalorder %s23, 0
      %p50 = por %p48, %p49
      %s52 = sadd.s32 %s51, 1
      %p55 = scmp.eq.s32.totalorder %s17, 1
      %p56 = scmp.ne.s32.totalorder %s51, %s53
      %p57 = scmp.eq.s32.totalorder %s17, 0
      %p58 = por %p56, %p57
      %p59 = scmp.ne.s32.totalorder %s51, %s53
      %p60 = scmp.eq.s32.totalorder %s22, 1
      %p61 = por %p59, %p60
      %p62 = scmp.ne.s32.totalorder %s53, %s54
      %p63 = scmp.eq.s32.totalorder %s22, 0
      %p64 = por %p62, %p63
      %p65 = scmp.ne.s32.totalorder %s53, %s54
      %p66 = scmp.eq.s32.totalorder %s23, 1
      %p67 = por %p65, %p66
      %p69 = scmp.ne.s32.totalorder %s54, %s68
      %p70 = scmp.eq.s32.totalorder %s23, 0
      %p71 = por %p69, %p70
      %s73 = sadd.s32 %s72, 1
      %p76 = scmp.eq.s32.totalorder %s17, 1
      %p77 = scmp.ne.s32.totalorder %s72, %s74
      %p78 = scmp.eq.s32.totalorder %s17, 0
      %p79 = por %p77, %p78
      %p80 = scmp.ne.s32.totalorder %s72, %s74
      %p81 = scmp.eq.s32.totalorder %s22, 1
      %p82 = por %p80, %p81
      %p83 = scmp.ne.s32.totalorder %s74, %s75
      %p84 = scmp.eq.s32.totalorder %s22, 0
      %p85 = por %p83, %p84
      %p86 = scmp.ne.s32.totalorder %s74, %s75
      %p87 = scmp.eq.s32.totalorder %s23, 1
      %p88 = por %p86, %p87
      %p90 = scmp.ne.s32.totalorder %s75, %s89
      %p91 = scmp.eq.s32.totalorder %s23, 0
      %p92 = por %p90, %p91
      %s94 = sadd.s32 %s93, 1
      %p97 = scmp.eq.s32.totalorder %s17, 1
      %p98 = scmp.ne.s32.totalorder %s93, %s95
      %p99 = scmp.eq.s32.totalorder %s17, 0
      %p100 = por %p98, %p99
      %p101 = scmp.ne.s32.totalorder %s93, %s95
      %p102 = scmp.eq.s32.totalorder %s22, 1
      %p103 = por %p101, %p102
      %p104 = scmp.ne.s32.totalorder %s95, %s96
      %p105 = scmp.eq.s32.totalorder %s22, 0
      %p106 = por %p104, %p105
      %p107 = scmp.ne.s32.totalorder %s95, %s96
      %p108 = scmp.eq.s32.totalorder %s23, 1
      %p109 = por %p107, %p108
      %p111 = scmp.ne.s32.totalorder %s96, %s110
      %p112 = scmp.eq.s32.totalorder %s23, 0
      %p113 = por %p111, %p112
      %s114 = ssub.s32 %s17, %s24
      %p115 = scmp.eq.s32.totalorder %s114, 0
      %s117 = sadd.s32 %s116, 1
      %s118 = scalar_select %p115, %s116, %s117
      %p121 = pneg %p115
      %p122 = scmp.eq.s32.totalorder %s17, 1
      %p123 = por %p121, %p122
      %p124 = scmp.ne.s32.totalorder %s116, %s119
      %p125 = scmp.eq.s32.totalorder %s17, 0
      %p126 = por %p124, %p125
      %p127 = scmp.ne.s32.totalorder %s116, %s119
      %p128 = scmp.eq.s32.totalorder %s22, 1
      %p129 = por %p127, %p128
      %p130 = scmp.ne.s32.totalorder %s119, %s120
      %p131 = scmp.eq.s32.totalorder %s22, 0
      %p132 = por %p130, %p131
      %p133 = scmp.ne.s32.totalorder %s119, %s120
      %p134 = scmp.eq.s32.totalorder %s23, 1
      %p135 = por %p133, %p134
      %p137 = scmp.ne.s32.totalorder %s120, %s136
      %p138 = scmp.eq.s32.totalorder %s23, 0
      %p139 = por %p137, %p138
      %p140 = scmp.le.s32.totalorder 1, %s17
      %p141 = scmp.lt.s32.totalorder %s17, 3
      %p142 = pnand %p140, %p141
      %p143 = pneg %p142
      // Predicated region
      $region9: #{tpu_custom_call.1} parent=5 // pred_check
        _
      $region10: #{tpu_custom_call.1} parent=5 // pred_check_branch
        %145 = sbr.rel (%p142) target = $region12
      $region11: #{tpu_custom_call.1} parent=5 // pred_region
        %s146 = ssub.s32 %s17, 1
        // Predicated region
        $region13: #{tpu_custom_call.1} parent=11 // pred_check
          %p147 = pneg %p64
        $region14: #{tpu_custom_call.1} parent=11 // pred_check_branch
          %149 = sbr.rel (%p147) target = $region16
        $region15: #{tpu_custom_call.1} parent=11 // pred_region
          %s151 = ssub.s32 512, 512
          %152 = vsyncadd [#allocation6], %s151
          %s153 = sshll.u32 [#allocation5], 4
          %s154 = int_to_ptr.vmem [resolvable:$true] %s153
          %159 = dma.hbm_to_vmem [thread:$0]  %s1, 512, %s154, [#allocation6], 128, 128, 8
        $region16: #{tpu_custom_call.1} parent=11 // pred_fallthru
          _
        // Predicated region
        $region17: #{tpu_custom_call.1} parent=11 // pred_check
          %p160 = pneg %p85
        $region18: #{tpu_custom_call.1} parent=11 // pred_check_branch
          %162 = sbr.rel (%p160) target = $region20
        $region19: #{tpu_custom_call.1} parent=11 // pred_region
          %s164 = ssub.s32 512, 512
          %165 = vsyncadd [#allocation6], %s164
          %s166 = sshll.u32 [#allocation7], 4
          %s167 = int_to_ptr.vmem [resolvable:$true] %s166
          %172 = dma.hbm_to_vmem [thread:$0]  %s2, 512, %s167, [#allocation6], 128, 128, 8
        $region20: #{tpu_custom_call.1} parent=11 // pred_fallthru
          _
        // Predicated region
        $region21: #{tpu_custom_call.1} parent=11 // pred_check
          %p173 = pneg %p106
        $region22: #{tpu_custom_call.1} parent=11 // pred_check_branch
          %175 = sbr.rel (%p173) target = $region24
        $region23: #{tpu_custom_call.1} parent=11 // pred_region
          _
        $region24: #{tpu_custom_call.1} parent=11 // pred_fallthru
          _
      $region12: #{tpu_custom_call.1} parent=5 // pred_fallthru
        _
      %p176 = scmp.lt.s32.totalorder %s17, 2
      // Predicated region
      $region25: #{tpu_custom_call.1} parent=5 // pred_check
        %p177 = pneg %p176
      $region26: #{tpu_custom_call.1} parent=5 // pred_check_branch
        %179 = sbr.rel (%p177) target = $region28
      $region27: #{tpu_custom_call.1} parent=5 // pred_region
        // Predicated region
        $region29: #{tpu_custom_call.1} parent=27 // pred_check
          %p180 = pneg %p37
        $region30: #{tpu_custom_call.1} parent=27 // pred_check_branch
          %182 = sbr.rel (%p180) target = $region32
        $region31: #{tpu_custom_call.1} parent=27 // pred_region
          %s183 = sand.u32 %s27, 1
          %s184 = scalar_lea.sflag [#allocation3], %s183
          %s185 = sand.u32 %s27, 1
          %s186 = smul.addr %s185, 8
          %s187 = scalar_lea.vmem [#allocation2], %s186
          %s189 = ssub.s32 128, 128
          %190 = vsyncadd %s184, %s189
          %s191 = smul.addr %s17, 128
          %s192 = scalar_lea.hbm %s0, %s191
          %s194 = sshll.u32 %s187, 4
          %s195 = int_to_ptr.vmem [resolvable:$true] %s194
          %197 = dma.hbm_to_vmem [thread:$0]  %s192, 128, %s195, %s184
        $region32: #{tpu_custom_call.1} parent=27 // pred_fallthru
          _
      $region28: #{tpu_custom_call.1} parent=5 // pred_fallthru
        _
      %p198 = scmp.le.s32.totalorder 1, %s17
      %p199 = scmp.lt.s32.totalorder %s17, 3
      %p200 = pnand %p198, %p199
      %p201 = pneg %p200
      // Predicated region
      $region33: #{tpu_custom_call.1} parent=5 // pred_check
        _
      $region34: #{tpu_custom_call.1} parent=5 // pred_check_branch
        %203 = sbr.rel (%p200) target = $region36
      $region35: #{tpu_custom_call.1} parent=5 // pred_region
        %s204 = ssub.s32 %s17, 1
        %s205 = sand.u32 %s30, 1
        %s206 = scalar_lea.sflag [#allocation3], %s205
        %s207 = sand.u32 %s30, 1
        %s208 = smul.addr %s207, 8
        %s209 = scalar_lea.vmem [#allocation2], %s208
        // Predicated region
        $region37: #{tpu_custom_call.1} parent=35 // pred_check
          %p210 = pneg %p43
        $region38: #{tpu_custom_call.1} parent=35 // pred_check_branch
          %212 = sbr.rel (%p210) target = $region40
        $region39: #{tpu_custom_call.1} parent=35 // pred_region
          %213 = dma.done %s206, 128
        $region40: #{tpu_custom_call.1} parent=35 // pred_fallthru
          _
        // Predicated region
        $region41: #{tpu_custom_call.1} parent=35 // pred_check
          %p214 = pneg %p64
        $region42: #{tpu_custom_call.1} parent=35 // pred_check_branch
          %216 = sbr.rel (%p214) target = $region44
        $region43: #{tpu_custom_call.1} parent=35 // pred_region
          %217 = dma.done [#allocation6], 512
        $region44: #{tpu_custom_call.1} parent=35 // pred_fallthru
          _
        // Predicated region
        $region45: #{tpu_custom_call.1} parent=35 // pred_check
          %p218 = pneg %p85
        $region46: #{tpu_custom_call.1} parent=35 // pred_check_branch
          %220 = sbr.rel (%p218) target = $region48
        $region47: #{tpu_custom_call.1} parent=35 // pred_region
          %221 = dma.done [#allocation6], 512
        $region48: #{tpu_custom_call.1} parent=35 // pred_fallthru
          _
        %s222 = sand.u32 %s30, 1
        %s223 = scalar_lea.sflag [#allocation3], %s222
        %s224 = sand.u32 %s30, 1
        %s225 = smul.addr %s224, 8
        %s226 = scalar_lea.vmem [#allocation2], %s225
        %p227 = pneg %p43
        %p228 = pneg %p40
        %p229 = pneg %p64
        %p230 = pneg %p61
        %p231 = pneg %p85
        %p232 = pneg %p82
        %p233 = pneg %p106
        %p234 = pneg %p103
        %p235 = pneg %p132
        %p236 = pneg %p129
        %s237 = sand.u32 %s119, 1
        %s238 = scalar_lea.sflag [#allocation4], %s237
        %s239 = sand.u32 %s119, 1
        %s240 = smul.addr %s239, 8
        %s241 = scalar_lea.vmem [#allocation8], %s240
        %v242 = vld [vmem:[%s209] sm:$0xff]
        %v243 = vld [vmem:[#allocation5] sm:$0xff]
        %v244 = vld [vmem:[#allocation5 + $0x8] sm:$0xff]
        %v245 = vld [vmem:[#allocation5 + $0x10] sm:$0xff]
        %v246 = vld [vmem:[#allocation5 + $0x18] sm:$0xff]
        %v247 = vld [vmem:[#allocation7] sm:$0xff]
        %v248 = vld [vmem:[#allocation7 + $0x8] sm:$0xff]
        %v249 = vld [vmem:[#allocation7 + $0x10] sm:$0xff]
        %v250 = vld [vmem:[#allocation7 + $0x18] sm:$0xff]
        %vm251 = vcmask 261120
        %v253 = vsel %vm251, %v242, 0
        %255 = vmatprep.subr.mxu0 0.0
        %256 = vmatpush1.msra.mxu0 0.0
        %257 = vmatprep.subr.mxu0 0.0
        %258 = vmatpush1.msra.mxu0 0.0
        %259 = vmatprep.subr.mxu0 0.0
        %260 = vmatpush1.msra.mxu0 0.0
        %261 = vmatprep.subr.mxu0 0.0
        %262 = vmatpush1.msra.mxu0 0.0
        %263 = vmatprep.subr.mxu0 0.0
        %264 = vmatpush1.msra.mxu0 0.0
        %265 = vmatprep.subr.mxu0 0.0
        %266 = vmatpush1.msra.mxu0 0.0
        %267 = vmatprep.subr.mxu0 0.0
        %268 = vmatpush1.msra.mxu0 0.0
        %269 = vmatprep.subr.mxu0 0.0
        %270 = vmatpush1.msra.mxu0 0.0
        %271 = vmatprep.subr.mxu0 0.0
        %272 = vmatpush1.msra.mxu0 0.0
        %273 = vmatprep.subr.mxu0 0.0
        %274 = vmatpush1.msra.mxu0 0.0
        %275 = vmatprep.subr.mxu0 0.0
        %276 = vmatpush1.msra.mxu0 0.0
        %277 = vmatprep.subr.mxu0 0.0
        %278 = vmatpush1.msra.mxu0 0.0
        %279 = vmatprep.subr.mxu0 0.0
        %280 = vmatpush1.msra.mxu0 %v246
        %281 = vmatprep.subr.mxu0 0.0
        %282 = vmatpush1.msra.mxu0 %v245
        %283 = vmatprep.subr.mxu0 0.0
        %284 = vmatpush1.msra.mxu0 %v244
        %285 = vmatprep.subr.mxu0 0.0
        %286 = vmatpush1.msra.mxu0 %v243
        %287 = vmatprep.subr.mxu0 0.0
        %288 = vmatpush2.msra.mxu0 0.0
        %289 = vmatprep.subr.mxu0 0.0
        %290 = vmatpush2.msra.mxu0 0.0
        %291 = vmatprep.subr.mxu0 0.0
        %292 = vmatpush2.msra.mxu0 0.0
        %293 = vmatprep.subr.mxu0 0.0
        %294 = vmatpush2.msra.mxu0 0.0
        %295 = vmatprep.subr.mxu0 0.0
        %296 = vmatpush2.msra.mxu0 0.0
        %297 = vmatprep.subr.mxu0 0.0
        %298 = vmatpush2.msra.mxu0 0.0
        %299 = vmatprep.subr.mxu0 0.0
        %300 = vmatpush2.msra.mxu0 0.0
        %301 = vmatprep.subr.mxu0 0.0
        %302 = vmatpush2.msra.mxu0 0.0
        %303 = vmatprep.subr.mxu0 0.0
        %304 = vmatpush2.msra.mxu0 0.0
        %305 = vmatprep.subr.mxu0 0.0
        %306 = vmatpush2.msra.mxu0 0.0
        %307 = vmatprep.subr.mxu0 0.0
        %308 = vmatpush2.msra.mxu0 0.0
        %309 = vmatprep.subr.mxu0 0.0
        %310 = vmatpush2.msra.mxu0 0.0
        %311 = vmatprep.subr.mxu0 0.0
        %312 = vmatpush2.msra.mxu0 0.0
        %313 = vmatprep.subr.mxu0 0.0
        %314 = vmatpush2.msra.mxu0 0.0
        %315 = vmatprep.subr.mxu0 0.0
        %316 = vmatpush2.msra.mxu0 0.0
        %317 = vmatprep.subr.mxu0 0.0
        %318 = vmatpush2.msra.mxu0 0.0
        %319 = vmatprep.mubr.f32.mxu0 0.0
        %320 = vmatmul.mubr.f32.gmra.mxu0 %v253
        %v321 = vpop.f32.mrf.mxu0
        %v322 = vadd.f32 0.0, %v321
        %v323 = vpop.f32.mrf.mxu0
        %324 = vdwg.mxu0
        %v325 = vmul.f32 %v322, 0.35355338
        %v326 = vlaneseq
        %v327 = vshrl.u32 %v326, 7
        %v328 = vlaneseq
        %v329 = vand.u32 %v328, 127
        %vm330 = vcmp.gt.s32.totalorder %v329, %v327
        %v331 = vsel %vm330, -1e+30, 0.0
        %333 = vrot.lane.b32.xlu0 %v322, 96
        %v334 = vpop.permute.xlu0 %333
        %vm335 = vcmask 64512
        %v337 = vsel %vm335, %v325, 0
        %v339 = vsel %vm335, %v334, 0
        %341 = vmatprep.subr.mxu0 0.0
        %342 = vmatpush1.xpose.msra.mxu0 0.0
        %343 = vmatprep.subr.mxu0 0.0
        %344 = vmatpush1.xpose.msra.mxu0 0.0
        %345 = vmatprep.subr.mxu0 0.0
        %346 = vmatpush1.xpose.msra.mxu0 0.0
        %347 = vmatprep.subr.mxu0 0.0
        %348 = vmatpush1.xpose.msra.mxu0 0.0
        %349 = vmatprep.subr.mxu0 0.0
        %350 = vmatpush1.xpose.msra.mxu0 0.0
        %351 = vmatprep.subr.mxu0 0.0
        %352 = vmatpush1.xpose.msra.mxu0 0.0
        %353 = vmatprep.subr.mxu0 0.0
        %354 = vmatpush1.xpose.msra.mxu0 0.0
        %355 = vmatprep.subr.mxu0 0.0
        %356 = vmatpush1.xpose.msra.mxu0 0.0
        %357 = vmatprep.subr.mxu0 0.0
        %358 = vmatpush1.xpose.msra.mxu0 0.0
        %359 = vmatprep.subr.mxu0 0.0
        %360 = vmatpush1.xpose.msra.mxu0 0.0
        %361 = vmatprep.subr.mxu0 0.0
        %362 = vmatpush1.xpose.msra.mxu0 0.0
        %363 = vmatprep.subr.mxu0 0.0
        %364 = vmatpush1.xpose.msra.mxu0 0.0
        %365 = vmatprep.subr.mxu0 0.0
        %366 = vmatpush1.xpose.msra.mxu0 0.0
        %367 = vmatprep.subr.mxu0 0.0
        %368 = vmatpush1.xpose.msra.mxu0 0.0
        %369 = vmatprep.subr.mxu0 0.0
        %370 = vmatpush1.xpose.msra.mxu0 0.0
        %371 = vmatprep.subr.mxu0 0.0
        %372 = vmatpush1.xpose.msra.mxu0 %v339
        %373 = vmatprep.subr.mxu0 0.0
        %374 = vmatpush2.xpose.msra.mxu0 0.0
        %375 = vmatprep.subr.mxu0 0.0
        %376 = vmatpush2.xpose.msra.mxu0 0.0
        %377 = vmatprep.subr.mxu0 0.0
        %378 = vmatpush2.xpose.msra.mxu0 0.0
        %379 = vmatprep.subr.mxu0 0.0
        %380 = vmatpush2.xpose.msra.mxu0 0.0
        %381 = vmatprep.subr.mxu0 0.0
        %382 = vmatpush2.xpose.msra.mxu0 0.0
        %383 = vmatprep.subr.mxu0 0.0
        %384 = vmatpush2.xpose.msra.mxu0 0.0
        %385 = vmatprep.subr.mxu0 0.0
        %386 = vmatpush2.xpose.msra.mxu0 0.0
        %387 = vmatprep.subr.mxu0 0.0
        %388 = vmatpush2.xpose.msra.mxu0 0.0
        %389 = vmatprep.subr.mxu0 0.0
        %390 = vmatpush2.xpose.msra.mxu0 0.0
        %391 = vmatprep.subr.mxu0 0.0
        %392 = vmatpush2.xpose.msra.mxu0 0.0
        %393 = vmatprep.subr.mxu0 0.0
        %394 = vmatpush2.xpose.msra.mxu0 0.0
        %395 = vmatprep.subr.mxu0 0.0
        %396 = vmatpush2.xpose.msra.mxu0 0.0
        %397 = vmatprep.subr.mxu0 0.0
        %398 = vmatpush2.xpose.msra.mxu0 0.0
        %399 = vmatprep.subr.mxu0 0.0
        %400 = vmatpush2.xpose.msra.mxu0 0.0
        %401 = vmatprep.subr.mxu0 0.0
        %402 = vmatpush2.xpose.msra.mxu0 0.0
        %403 = vmatprep.subr.mxu0 0.0
        %404 = vmatpush2.xpose.msra.mxu0 0.0
        %405 = vmatprep.mubr.f32.mxu0 0.0
        %406 = vmatmul.mubr.f32.gmra.mxu0 %v337
        %v407 = vpop.f32.mrf.mxu0
        %v408 = vadd.f32 %v331, %v407
        %v409 = vpop.f32.mrf.mxu0
        %410 = vdwg.mxu0
        %v411 = vsel %vm335, %v408, -inf
        %412 = vmax.xlane.f32.xlu0 %v411
        %v413 = vpop.xlane.xlu0 %412
        %v414 = vsub.f32 %v408, %v413
        %v415 = vmul.f32 %v414, 1.442695
        %v416 = vpow.pop %v415
        %v417 = vsel %vm335, %v416, 0.0
        %418 = vadd.xlane.f32.xlu0 %v417
        %v419 = vpop.xlane.xlu0 %418
        %420 = vrot.lane.b32.xlu0 %v322, 64
        %v421 = vpop.permute.xlu0 %420
        %v424 = vsel %vm335, %v416, 0
        %426 = vmatprep.subr.mxu0 0.0
        %427 = vmatpush1.msra.mxu0 0.0
        %428 = vmatprep.subr.mxu0 0.0
        %429 = vmatpush1.msra.mxu0 0.0
        %430 = vmatprep.subr.mxu0 0.0
        %431 = vmatpush1.msra.mxu0 0.0
        %432 = vmatprep.subr.mxu0 0.0
        %433 = vmatpush1.msra.mxu0 0.0
        %434 = vmatprep.subr.mxu0 0.0
        %435 = vmatpush1.msra.mxu0 0.0
        %436 = vmatprep.subr.mxu0 0.0
        %437 = vmatpush1.msra.mxu0 0.0
        %438 = vmatprep.subr.mxu0 0.0
        %439 = vmatpush1.msra.mxu0 0.0
        %440 = vmatprep.subr.mxu0 0.0
        %441 = vmatpush1.msra.mxu0 0.0
        %442 = vmatprep.subr.mxu0 0.0
        %443 = vmatpush1.msra.mxu0 0.0
        %444 = vmatprep.subr.mxu0 0.0
        %445 = vmatpush1.msra.mxu0 0.0
        %446 = vmatprep.subr.mxu0 0.0
        %447 = vmatpush1.msra.mxu0 0.0
        %448 = vmatprep.subr.mxu0 0.0
        %449 = vmatpush1.msra.mxu0 0.0
        %450 = vmatprep.subr.mxu0 0.0
        %451 = vmatpush1.msra.mxu0 0.0
        %452 = vmatprep.subr.mxu0 0.0
        %453 = vmatpush1.msra.mxu0 0.0
        %454 = vmatprep.subr.mxu0 0.0
        %455 = vmatpush1.msra.mxu0 0.0
        %456 = vmatprep.subr.mxu0 0.0
        %457 = vmatpush1.msra.mxu0 %v421
        %458 = vmatprep.subr.mxu0 0.0
        %459 = vmatpush2.msra.mxu0 0.0
        %460 = vmatprep.subr.mxu0 0.0
        %461 = vmatpush2.msra.mxu0 0.0
        %462 = vmatprep.subr.mxu0 0.0
        %463 = vmatpush2.msra.mxu0 0.0
        %464 = vmatprep.subr.mxu0 0.0
        %465 = vmatpush2.msra.mxu0 0.0
        %466 = vmatprep.subr.mxu0 0.0
        %467 = vmatpush2.msra.mxu0 0.0
        %468 = vmatprep.subr.mxu0 0.0
        %469 = vmatpush2.msra.mxu0 0.0
        %470 = vmatprep.subr.mxu0 0.0
        %471 = vmatpush2.msra.mxu0 0.0
        %472 = vmatprep.subr.mxu0 0.0
        %473 = vmatpush2.msra.mxu0 0.0
        %474 = vmatprep.subr.mxu0 0.0
        %475 = vmatpush2.msra.mxu0 0.0
        %476 = vmatprep.subr.mxu0 0.0
        %477 = vmatpush2.msra.mxu0 0.0
        %478 = vmatprep.subr.mxu0 0.0
        %479 = vmatpush2.msra.mxu0 0.0
        %480 = vmatprep.subr.mxu0 0.0
        %481 = vmatpush2.msra.mxu0 0.0
        %482 = vmatprep.subr.mxu0 0.0
        %483 = vmatpush2.msra.mxu0 0.0
        %484 = vmatprep.subr.mxu0 0.0
        %485 = vmatpush2.msra.mxu0 0.0
        %486 = vmatprep.subr.mxu0 0.0
        %487 = vmatpush2.msra.mxu0 0.0
        %488 = vmatprep.subr.mxu0 0.0
        %489 = vmatpush2.msra.mxu0 0.0
        %490 = vmatprep.mubr.f32.mxu0 0.0
        %491 = vmatmul.mubr.f32.gmra.mxu0 %v424
        %v492 = vpop.f32.mrf.mxu0
        %v493 = vadd.f32 0.0, %v492
        %v494 = vpop.f32.mrf.mxu0
        %495 = vdwg.mxu0
        %v496 = vrcp.pop %v419
        %v497 = vmul.f32 %v493, %v496
        %498 = vrot.lane.b32.xlu0 %v325, 120
        %v499 = vpop.permute.xlu0 %498
        %500 = vrot.lane.b32.xlu0 %v322, 88
        %v501 = vpop.permute.xlu0 %500
        %v502 = vsel %vm335, %v499, 0
        %v504 = vsel %vm335, %v501, 0
        %506 = vmatprep.subr.mxu0 0.0
        %507 = vmatpush1.xpose.msra.mxu0 0.0
        %508 = vmatprep.subr.mxu0 0.0
        %509 = vmatpush1.xpose.msra.mxu0 0.0
        %510 = vmatprep.subr.mxu0 0.0
        %511 = vmatpush1.xpose.msra.mxu0 0.0
        %512 = vmatprep.subr.mxu0 0.0
        %513 = vmatpush1.xpose.msra.mxu0 0.0
        %514 = vmatprep.subr.mxu0 0.0
        %515 = vmatpush1.xpose.msra.mxu0 0.0
        %516 = vmatprep.subr.mxu0 0.0
        %517 = vmatpush1.xpose.msra.mxu0 0.0
        %518 = vmatprep.subr.mxu0 0.0
        %519 = vmatpush1.xpose.msra.mxu0 0.0
        %520 = vmatprep.subr.mxu0 0.0
        %521 = vmatpush1.xpose.msra.mxu0 0.0
        %522 = vmatprep.subr.mxu0 0.0
        %523 = vmatpush1.xpose.msra.mxu0 0.0
        %524 = vmatprep.subr.mxu0 0.0
        %525 = vmatpush1.xpose.msra.mxu0 0.0
        %526 = vmatprep.subr.mxu0 0.0
        %527 = vmatpush1.xpose.msra.mxu0 0.0
        %528 = vmatprep.subr.mxu0 0.0
        %529 = vmatpush1.xpose.msra.mxu0 0.0
        %530 = vmatprep.subr.mxu0 0.0
        %531 = vmatpush1.xpose.msra.mxu0 0.0
        %532 = vmatprep.subr.mxu0 0.0
        %533 = vmatpush1.xpose.msra.mxu0 0.0
        %534 = vmatprep.subr.mxu0 0.0
        %535 = vmatpush1.xpose.msra.mxu0 0.0
        %536 = vmatprep.subr.mxu0 0.0
        %537 = vmatpush1.xpose.msra.mxu0 %v504
        %538 = vmatprep.subr.mxu0 0.0
        %539 = vmatpush2.xpose.msra.mxu0 0.0
        %540 = vmatprep.subr.mxu0 0.0
        %541 = vmatpush2.xpose.msra.mxu0 0.0
        %542 = vmatprep.subr.mxu0 0.0
        %543 = vmatpush2.xpose.msra.mxu0 0.0
        %544 = vmatprep.subr.mxu0 0.0
        %545 = vmatpush2.xpose.msra.mxu0 0.0
        %546 = vmatprep.subr.mxu0 0.0
        %547 = vmatpush2.xpose.msra.mxu0 0.0
        %548 = vmatprep.subr.mxu0 0.0
        %549 = vmatpush2.xpose.msra.mxu0 0.0
        %550 = vmatprep.subr.mxu0 0.0
        %551 = vmatpush2.xpose.msra.mxu0 0.0
        %552 = vmatprep.subr.mxu0 0.0
        %553 = vmatpush2.xpose.msra.mxu0 0.0
        %554 = vmatprep.subr.mxu0 0.0
        %555 = vmatpush2.xpose.msra.mxu0 0.0
        %556 = vmatprep.subr.mxu0 0.0
        %557 = vmatpush2.xpose.msra.mxu0 0.0
        %558 = vmatprep.subr.mxu0 0.0
        %559 = vmatpush2.xpose.msra.mxu0 0.0
        %560 = vmatprep.subr.mxu0 0.0
        %561 = vmatpush2.xpose.msra.mxu0 0.0
        %562 = vmatprep.subr.mxu0 0.0
        %563 = vmatpush2.xpose.msra.mxu0 0.0
        %564 = vmatprep.subr.mxu0 0.0
        %565 = vmatpush2.xpose.msra.mxu0 0.0
        %566 = vmatprep.subr.mxu0 0.0
        %567 = vmatpush2.xpose.msra.mxu0 0.0
        %568 = vmatprep.subr.mxu0 0.0
        %569 = vmatpush2.xpose.msra.mxu0 0.0
        %570 = vmatprep.mubr.f32.mxu0 0.0
        %571 = vmatmul.mubr.f32.gmra.mxu0 %v502
        %v572 = vpop.f32.mrf.mxu0
        %v573 = vadd.f32 %v331, %v572
        %v574 = vpop.f32.mrf.mxu0
        %575 = vdwg.mxu0
        %v576 = vsel %vm335, %v573, -inf
        %577 = vmax.xlane.f32.xlu0 %v576
        %v578 = vpop.xlane.xlu0 %577
        %v579 = vsub.f32 %v573, %v578
        %v580 = vmul.f32 %v579, 1.442695
        %v581 = vpow.pop %v580
        %v582 = vsel %vm335, %v581, 0.0
        %583 = vadd.xlane.f32.xlu0 %v582
        %v584 = vpop.xlane.xlu0 %583
        %585 = vrot.lane.b32.xlu0 %v322, 56
        %v586 = vpop.permute.xlu0 %585
        %v589 = vsel %vm335, %v581, 0
        %591 = vmatprep.subr.mxu0 0.0
        %592 = vmatpush1.msra.mxu0 0.0
        %593 = vmatprep.subr.mxu0 0.0
        %594 = vmatpush1.msra.mxu0 0.0
        %595 = vmatprep.subr.mxu0 0.0
        %596 = vmatpush1.msra.mxu0 0.0
        %597 = vmatprep.subr.mxu0 0.0
        %598 = vmatpush1.msra.mxu0 0.0
        %599 = vmatprep.subr.mxu0 0.0
        %600 = vmatpush1.msra.mxu0 0.0
        %601 = vmatprep.subr.mxu0 0.0
        %602 = vmatpush1.msra.mxu0 0.0
        %603 = vmatprep.subr.mxu0 0.0
        %604 = vmatpush1.msra.mxu0 0.0
        %605 = vmatprep.subr.mxu0 0.0
        %606 = vmatpush1.msra.mxu0 0.0
        %607 = vmatprep.subr.mxu0 0.0
        %608 = vmatpush1.msra.mxu0 0.0
        %609 = vmatprep.subr.mxu0 0.0
        %610 = vmatpush1.msra.mxu0 0.0
        %611 = vmatprep.subr.mxu0 0.0
        %612 = vmatpush1.msra.mxu0 0.0
        %613 = vmatprep.subr.mxu0 0.0
        %614 = vmatpush1.msra.mxu0 0.0
        %615 = vmatprep.subr.mxu0 0.0
        %616 = vmatpush1.msra.mxu0 0.0
        %617 = vmatprep.subr.mxu0 0.0
        %618 = vmatpush1.msra.mxu0 0.0
        %619 = vmatprep.subr.mxu0 0.0
        %620 = vmatpush1.msra.mxu0 0.0
        %621 = vmatprep.subr.mxu0 0.0
        %622 = vmatpush1.msra.mxu0 %v586
        %623 = vmatprep.subr.mxu0 0.0
        %624 = vmatpush2.msra.mxu0 0.0
        %625 = vmatprep.subr.mxu0 0.0
        %626 = vmatpush2.msra.mxu0 0.0
        %627 = vmatprep.subr.mxu0 0.0
        %628 = vmatpush2.msra.mxu0 0.0
        %629 = vmatprep.subr.mxu0 0.0
        %630 = vmatpush2.msra.mxu0 0.0
        %631 = vmatprep.subr.mxu0 0.0
        %632 = vmatpush2.msra.mxu0 0.0
        %633 = vmatprep.subr.mxu0 0.0
        %634 = vmatpush2.msra.mxu0 0.0
        %635 = vmatprep.subr.mxu0 0.0
        %636 = vmatpush2.msra.mxu0 0.0
        %637 = vmatprep.subr.mxu0 0.0
        %638 = vmatpush2.msra.mxu0 0.0
        %639 = vmatprep.subr.mxu0 0.0
        %640 = vmatpush2.msra.mxu0 0.0
        %641 = vmatprep.subr.mxu0 0.0
        %642 = vmatpush2.msra.mxu0 0.0
        %643 = vmatprep.subr.mxu0 0.0
        %644 = vmatpush2.msra.mxu0 0.0
        %645 = vmatprep.subr.mxu0 0.0
        %646 = vmatpush2.msra.mxu0 0.0
        %647 = vmatprep.subr.mxu0 0.0
        %648 = vmatpush2.msra.mxu0 0.0
        %649 = vmatprep.subr.mxu0 0.0
        %650 = vmatpush2.msra.mxu0 0.0
        %651 = vmatprep.subr.mxu0 0.0
        %652 = vmatpush2.msra.mxu0 0.0
        %653 = vmatprep.subr.mxu0 0.0
        %654 = vmatpush2.msra.mxu0 0.0
        %655 = vmatprep.mubr.f32.mxu0 0.0
        %656 = vmatmul.mubr.f32.gmra.mxu0 %v589
        %v657 = vpop.f32.mrf.mxu0
        %v658 = vadd.f32 0.0, %v657
        %v659 = vpop.f32.mrf.mxu0
        %660 = vdwg.mxu0
        %v661 = vrcp.pop %v584
        %v662 = vmul.f32 %v658, %v661
        %v664 = vsel %vm335, %v662, 0
        %666 = vmatprep.subr.mxu0 0.0
        %667 = vmatpush1.msra.mxu0 0.0
        %668 = vmatprep.subr.mxu0 0.0
        %669 = vmatpush1.msra.mxu0 0.0
        %670 = vmatprep.subr.mxu0 0.0
        %671 = vmatpush1.msra.mxu0 0.0
        %672 = vmatprep.subr.mxu0 0.0
        %673 = vmatpush1.msra.mxu0 0.0
        %674 = vmatprep.subr.mxu0 0.0
        %675 = vmatpush1.msra.mxu0 0.0
        %676 = vmatprep.subr.mxu0 0.0
        %677 = vmatpush1.msra.mxu0 0.0
        %678 = vmatprep.subr.mxu0 0.0
        %679 = vmatpush1.msra.mxu0 0.0
        %680 = vmatprep.subr.mxu0 0.0
        %681 = vmatpush1.msra.mxu0 0.0
        %682 = vmatprep.subr.mxu0 0.0
        %683 = vmatpush1.msra.mxu0 0.0
        %684 = vmatprep.subr.mxu0 0.0
        %685 = vmatpush1.msra.mxu0 0.0
        %686 = vmatprep.subr.mxu0 0.0
        %687 = vmatpush1.msra.mxu0 0.0
        %688 = vmatprep.subr.mxu0 0.0
        %689 = vmatpush1.msra.mxu0 0.0
        %690 = vmatprep.subr.mxu0 0.0
        %691 = vmatpush1.msra.mxu0 0.0
        %692 = vmatprep.subr.mxu0 0.0
        %693 = vmatpush1.msra.mxu0 0.0
        %694 = vmatprep.subr.mxu0 0.0
        %695 = vmatpush1.msra.mxu0 0.0
        %696 = vmatprep.subr.mxu0 0.0
        %697 = vmatpush1.msra.mxu0 %v248
        %698 = vmatprep.subr.mxu0 0.0
        %699 = vmatpush2.msra.mxu0 0.0
        %700 = vmatprep.subr.mxu0 0.0
        %701 = vmatpush2.msra.mxu0 0.0
        %702 = vmatprep.subr.mxu0 0.0
        %703 = vmatpush2.msra.mxu0 0.0
        %704 = vmatprep.subr.mxu0 0.0
        %705 = vmatpush2.msra.mxu0 0.0
        %706 = vmatprep.subr.mxu0 0.0
        %707 = vmatpush2.msra.mxu0 0.0
        %708 = vmatprep.subr.mxu0 0.0
        %709 = vmatpush2.msra.mxu0 0.0
        %710 = vmatprep.subr.mxu0 0.0
        %711 = vmatpush2.msra.mxu0 0.0
        %712 = vmatprep.subr.mxu0 0.0
        %713 = vmatpush2.msra.mxu0 0.0
        %714 = vmatprep.subr.mxu0 0.0
        %715 = vmatpush2.msra.mxu0 0.0
        %716 = vmatprep.subr.mxu0 0.0
        %717 = vmatpush2.msra.mxu0 0.0
        %718 = vmatprep.subr.mxu0 0.0
        %719 = vmatpush2.msra.mxu0 0.0
        %720 = vmatprep.subr.mxu0 0.0
        %721 = vmatpush2.msra.mxu0 0.0
        %722 = vmatprep.subr.mxu0 0.0
        %723 = vmatpush2.msra.mxu0 0.0
        %724 = vmatprep.subr.mxu0 0.0
        %725 = vmatpush2.msra.mxu0 0.0
        %726 = vmatprep.subr.mxu0 0.0
        %727 = vmatpush2.msra.mxu0 0.0
        %728 = vmatprep.subr.mxu0 0.0
        %729 = vmatpush2.msra.mxu0 0.0
        %730 = vmatprep.mubr.f32.mxu0 0.0
        %731 = vmatmul.mubr.f32.gmra.mxu0 %v664
        %v732 = vpop.f32.mrf.mxu0
        %v733 = vadd.f32 0.0, %v732
        %v734 = vpop.f32.mrf.mxu0
        %735 = vdwg.mxu0
        %v737 = vsel %vm335, %v497, 0
        %739 = vmatprep.subr.mxu0 0.0
        %740 = vmatpush1.msra.mxu0 0.0
        %741 = vmatprep.subr.mxu0 0.0
        %742 = vmatpush1.msra.mxu0 0.0
        %743 = vmatprep.subr.mxu0 0.0
        %744 = vmatpush1.msra.mxu0 0.0
        %745 = vmatprep.subr.mxu0 0.0
        %746 = vmatpush1.msra.mxu0 0.0
        %747 = vmatprep.subr.mxu0 0.0
        %748 = vmatpush1.msra.mxu0 0.0
        %749 = vmatprep.subr.mxu0 0.0
        %750 = vmatpush1.msra.mxu0 0.0
        %751 = vmatprep.subr.mxu0 0.0
        %752 = vmatpush1.msra.mxu0 0.0
        %753 = vmatprep.subr.mxu0 0.0
        %754 = vmatpush1.msra.mxu0 0.0
        %755 = vmatprep.subr.mxu0 0.0
        %756 = vmatpush1.msra.mxu0 0.0
        %757 = vmatprep.subr.mxu0 0.0
        %758 = vmatpush1.msra.mxu0 0.0
        %759 = vmatprep.subr.mxu0 0.0
        %760 = vmatpush1.msra.mxu0 0.0
        %761 = vmatprep.subr.mxu0 0.0
        %762 = vmatpush1.msra.mxu0 0.0
        %763 = vmatprep.subr.mxu0 0.0
        %764 = vmatpush1.msra.mxu0 0.0
        %765 = vmatprep.subr.mxu0 0.0
        %766 = vmatpush1.msra.mxu0 0.0
        %767 = vmatprep.subr.mxu0 0.0
        %768 = vmatpush1.msra.mxu0 0.0
        %769 = vmatprep.subr.mxu0 0.0
        %770 = vmatpush1.msra.mxu0 %v247
        %771 = vmatprep.subr.mxu0 0.0
        %772 = vmatpush2.msra.mxu0 0.0
        %773 = vmatprep.subr.mxu0 0.0
        %774 = vmatpush2.msra.mxu0 0.0
        %775 = vmatprep.subr.mxu0 0.0
        %776 = vmatpush2.msra.mxu0 0.0
        %777 = vmatprep.subr.mxu0 0.0
        %778 = vmatpush2.msra.mxu0 0.0
        %779 = vmatprep.subr.mxu0 0.0
        %780 = vmatpush2.msra.mxu0 0.0
        %781 = vmatprep.subr.mxu0 0.0
        %782 = vmatpush2.msra.mxu0 0.0
        %783 = vmatprep.subr.mxu0 0.0
        %784 = vmatpush2.msra.mxu0 0.0
        %785 = vmatprep.subr.mxu0 0.0
        %786 = vmatpush2.msra.mxu0 0.0
        %787 = vmatprep.subr.mxu0 0.0
        %788 = vmatpush2.msra.mxu0 0.0
        %789 = vmatprep.subr.mxu0 0.0
        %790 = vmatpush2.msra.mxu0 0.0
        %791 = vmatprep.subr.mxu0 0.0
        %792 = vmatpush2.msra.mxu0 0.0
        %793 = vmatprep.subr.mxu0 0.0
        %794 = vmatpush2.msra.mxu0 0.0
        %795 = vmatprep.subr.mxu0 0.0
        %796 = vmatpush2.msra.mxu0 0.0
        %797 = vmatprep.subr.mxu0 0.0
        %798 = vmatpush2.msra.mxu0 0.0
        %799 = vmatprep.subr.mxu0 0.0
        %800 = vmatpush2.msra.mxu0 0.0
        %801 = vmatprep.subr.mxu0 0.0
        %802 = vmatpush2.msra.mxu0 0.0
        %803 = vmatprep.mubr.f32.mxu0 0.0
        %804 = vmatmul.mubr.f32.gmra.mxu0 %v737
        %v805 = vpop.f32.mrf.mxu0
        %v806 = vadd.f32 %v733, %v805
        %v807 = vpop.f32.mrf.mxu0
        %808 = vdwg.mxu0
        %809 = vrot.lane.b32.xlu0 %v325, 112
        %v810 = vpop.permute.xlu0 %809
        %811 = vrot.lane.b32.xlu0 %v322, 80
        %v812 = vpop.permute.xlu0 %811
        %v813 = vsel %vm335, %v810, 0
        %v815 = vsel %vm335, %v812, 0
        %817 = vmatprep.subr.mxu0 0.0
        %818 = vmatpush1.xpose.msra.mxu0 0.0
        %819 = vmatprep.subr.mxu0 0.0
        %820 = vmatpush1.xpose.msra.mxu0 0.0
        %821 = vmatprep.subr.mxu0 0.0
        %822 = vmatpush1.xpose.msra.mxu0 0.0
        %823 = vmatprep.subr.mxu0 0.0
        %824 = vmatpush1.xpose.msra.mxu0 0.0
        %825 = vmatprep.subr.mxu0 0.0
        %826 = vmatpush1.xpose.msra.mxu0 0.0
        %827 = vmatprep.subr.mxu0 0.0
        %828 = vmatpush1.xpose.msra.mxu0 0.0
        %829 = vmatprep.subr.mxu0 0.0
        %830 = vmatpush1.xpose.msra.mxu0 0.0
        %831 = vmatprep.subr.mxu0 0.0
        %832 = vmatpush1.xpose.msra.mxu0 0.0
        %833 = vmatprep.subr.mxu0 0.0
        %834 = vmatpush1.xpose.msra.mxu0 0.0
        %835 = vmatprep.subr.mxu0 0.0
        %836 = vmatpush1.xpose.msra.mxu0 0.0
        %837 = vmatprep.subr.mxu0 0.0
        %838 = vmatpush1.xpose.msra.mxu0 0.0
        %839 = vmatprep.subr.mxu0 0.0
        %840 = vmatpush1.xpose.msra.mxu0 0.0
        %841 = vmatprep.subr.mxu0 0.0
        %842 = vmatpush1.xpose.msra.mxu0 0.0
        %843 = vmatprep.subr.mxu0 0.0
        %844 = vmatpush1.xpose.msra.mxu0 0.0
        %845 = vmatprep.subr.mxu0 0.0
        %846 = vmatpush1.xpose.msra.mxu0 0.0
        %847 = vmatprep.subr.mxu0 0.0
        %848 = vmatpush1.xpose.msra.mxu0 %v815
        %849 = vmatprep.subr.mxu0 0.0
        %850 = vmatpush2.xpose.msra.mxu0 0.0
        %851 = vmatprep.subr.mxu0 0.0
        %852 = vmatpush2.xpose.msra.mxu0 0.0
        %853 = vmatprep.subr.mxu0 0.0
        %854 = vmatpush2.xpose.msra.mxu0 0.0
        %855 = vmatprep.subr.mxu0 0.0
        %856 = vmatpush2.xpose.msra.mxu0 0.0
        %857 = vmatprep.subr.mxu0 0.0
        %858 = vmatpush2.xpose.msra.mxu0 0.0
        %859 = vmatprep.subr.mxu0 0.0
        %860 = vmatpush2.xpose.msra.mxu0 0.0
        %861 = vmatprep.subr.mxu0 0.0
        %862 = vmatpush2.xpose.msra.mxu0 0.0
        %863 = vmatprep.subr.mxu0 0.0
        %864 = vmatpush2.xpose.msra.mxu0 0.0
        %865 = vmatprep.subr.mxu0 0.0
        %866 = vmatpush2.xpose.msra.mxu0 0.0
        %867 = vmatprep.subr.mxu0 0.0
        %868 = vmatpush2.xpose.msra.mxu0 0.0
        %869 = vmatprep.subr.mxu0 0.0
        %870 = vmatpush2.xpose.msra.mxu0 0.0
        %871 = vmatprep.subr.mxu0 0.0
        %872 = vmatpush2.xpose.msra.mxu0 0.0
        %873 = vmatprep.subr.mxu0 0.0
        %874 = vmatpush2.xpose.msra.mxu0 0.0
        %875 = vmatprep.subr.mxu0 0.0
        %876 = vmatpush2.xpose.msra.mxu0 0.0
        %877 = vmatprep.subr.mxu0 0.0
        %878 = vmatpush2.xpose.msra.mxu0 0.0
        %879 = vmatprep.subr.mxu0 0.0
        %880 = vmatpush2.xpose.msra.mxu0 0.0
        %881 = vmatprep.mubr.f32.mxu0 0.0
        %882 = vmatmul.mubr.f32.gmra.mxu0 %v813
        %v883 = vpop.f32.mrf.mxu0
        %v884 = vadd.f32 %v331, %v883
        %v885 = vpop.f32.mrf.mxu0
        %886 = vdwg.mxu0
        %v887 = vsel %vm335, %v884, -inf
        %888 = vmax.xlane.f32.xlu0 %v887
        %v889 = vpop.xlane.xlu0 %888
        %v890 = vsub.f32 %v884, %v889
        %v891 = vmul.f32 %v890, 1.442695
        %v892 = vpow.pop %v891
        %v893 = vsel %vm335, %v892, 0.0
        %894 = vadd.xlane.f32.xlu0 %v893
        %v895 = vpop.xlane.xlu0 %894
        %896 = vrot.lane.b32.xlu0 %v322, 48
        %v897 = vpop.permute.xlu0 %896
        %v900 = vsel %vm335, %v892, 0
        %902 = vmatprep.subr.mxu0 0.0
        %903 = vmatpush1.msra.mxu0 0.0
        %904 = vmatprep.subr.mxu0 0.0
        %905 = vmatpush1.msra.mxu0 0.0
        %906 = vmatprep.subr.mxu0 0.0
        %907 = vmatpush1.msra.mxu0 0.0
        %908 = vmatprep.subr.mxu0 0.0
        %909 = vmatpush1.msra.mxu0 0.0
        %910 = vmatprep.subr.mxu0 0.0
        %911 = vmatpush1.msra.mxu0 0.0
        %912 = vmatprep.subr.mxu0 0.0
        %913 = vmatpush1.msra.mxu0 0.0
        %914 = vmatprep.subr.mxu0 0.0
        %915 = vmatpush1.msra.mxu0 0.0
        %916 = vmatprep.subr.mxu0 0.0
        %917 = vmatpush1.msra.mxu0 0.0
        %918 = vmatprep.subr.mxu0 0.0
        %919 = vmatpush1.msra.mxu0 0.0
        %920 = vmatprep.subr.mxu0 0.0
        %921 = vmatpush1.msra.mxu0 0.0
        %922 = vmatprep.subr.mxu0 0.0
        %923 = vmatpush1.msra.mxu0 0.0
        %924 = vmatprep.subr.mxu0 0.0
        %925 = vmatpush1.msra.mxu0 0.0
        %926 = vmatprep.subr.mxu0 0.0
        %927 = vmatpush1.msra.mxu0 0.0
        %928 = vmatprep.subr.mxu0 0.0
        %929 = vmatpush1.msra.mxu0 0.0
        %930 = vmatprep.subr.mxu0 0.0
        %931 = vmatpush1.msra.mxu0 0.0
        %932 = vmatprep.subr.mxu0 0.0
        %933 = vmatpush1.msra.mxu0 %v897
        %934 = vmatprep.subr.mxu0 0.0
        %935 = vmatpush2.msra.mxu0 0.0
        %936 = vmatprep.subr.mxu0 0.0
        %937 = vmatpush2.msra.mxu0 0.0
        %938 = vmatprep.subr.mxu0 0.0
        %939 = vmatpush2.msra.mxu0 0.0
        %940 = vmatprep.subr.mxu0 0.0
        %941 = vmatpush2.msra.mxu0 0.0
        %942 = vmatprep.subr.mxu0 0.0
        %943 = vmatpush2.msra.mxu0 0.0
        %944 = vmatprep.subr.mxu0 0.0
        %945 = vmatpush2.msra.mxu0 0.0
        %946 = vmatprep.subr.mxu0 0.0
        %947 = vmatpush2.msra.mxu0 0.0
        %948 = vmatprep.subr.mxu0 0.0
        %949 = vmatpush2.msra.mxu0 0.0
        %950 = vmatprep.subr.mxu0 0.0
        %951 = vmatpush2.msra.mxu0 0.0
        %952 = vmatprep.subr.mxu0 0.0
        %953 = vmatpush2.msra.mxu0 0.0
        %954 = vmatprep.subr.mxu0 0.0
        %955 = vmatpush2.msra.mxu0 0.0
        %956 = vmatprep.subr.mxu0 0.0
        %957 = vmatpush2.msra.mxu0 0.0
        %958 = vmatprep.subr.mxu0 0.0
        %959 = vmatpush2.msra.mxu0 0.0
        %960 = vmatprep.subr.mxu0 0.0
        %961 = vmatpush2.msra.mxu0 0.0
        %962 = vmatprep.subr.mxu0 0.0
        %963 = vmatpush2.msra.mxu0 0.0
        %964 = vmatprep.subr.mxu0 0.0
        %965 = vmatpush2.msra.mxu0 0.0
        %966 = vmatprep.mubr.f32.mxu0 0.0
        %967 = vmatmul.mubr.f32.gmra.mxu0 %v900
        %v968 = vpop.f32.mrf.mxu0
        %v969 = vadd.f32 0.0, %v968
        %v970 = vpop.f32.mrf.mxu0
        %971 = vdwg.mxu0
        %v972 = vrcp.pop %v895
        %v973 = vmul.f32 %v969, %v972
        %v975 = vsel %vm335, %v973, 0
        %977 = vmatprep.subr.mxu0 0.0
        %978 = vmatpush1.msra.mxu0 0.0
        %979 = vmatprep.subr.mxu0 0.0
        %980 = vmatpush1.msra.mxu0 0.0
        %981 = vmatprep.subr.mxu0 0.0
        %982 = vmatpush1.msra.mxu0 0.0
        %983 = vmatprep.subr.mxu0 0.0
        %984 = vmatpush1.msra.mxu0 0.0
        %985 = vmatprep.subr.mxu0 0.0
        %986 = vmatpush1.msra.mxu0 0.0
        %987 = vmatprep.subr.mxu0 0.0
        %988 = vmatpush1.msra.mxu0 0.0
        %989 = vmatprep.subr.mxu0 0.0
        %990 = vmatpush1.msra.mxu0 0.0
        %991 = vmatprep.subr.mxu0 0.0
        %992 = vmatpush1.msra.mxu0 0.0
        %993 = vmatprep.subr.mxu0 0.0
        %994 = vmatpush1.msra.mxu0 0.0
        %995 = vmatprep.subr.mxu0 0.0
        %996 = vmatpush1.msra.mxu0 0.0
        %997 = vmatprep.subr.mxu0 0.0
        %998 = vmatpush1.msra.mxu0 0.0
        %999 = vmatprep.subr.mxu0 0.0
        %1000 = vmatpush1.msra.mxu0 0.0
        %1001 = vmatprep.subr.mxu0 0.0
        %1002 = vmatpush1.msra.mxu0 0.0
        %1003 = vmatprep.subr.mxu0 0.0
        %1004 = vmatpush1.msra.mxu0 0.0
        %1005 = vmatprep.subr.mxu0 0.0
        %1006 = vmatpush1.msra.mxu0 0.0
        %1007 = vmatprep.subr.mxu0 0.0
        %1008 = vmatpush1.msra.mxu0 %v249
        %1009 = vmatprep.subr.mxu0 0.0
        %1010 = vmatpush2.msra.mxu0 0.0
        %1011 = vmatprep.subr.mxu0 0.0
        %1012 = vmatpush2.msra.mxu0 0.0
        %1013 = vmatprep.subr.mxu0 0.0
        %1014 = vmatpush2.msra.mxu0 0.0
        %1015 = vmatprep.subr.mxu0 0.0
        %1016 = vmatpush2.msra.mxu0 0.0
        %1017 = vmatprep.subr.mxu0 0.0
        %1018 = vmatpush2.msra.mxu0 0.0
        %1019 = vmatprep.subr.mxu0 0.0
        %1020 = vmatpush2.msra.mxu0 0.0
        %1021 = vmatprep.subr.mxu0 0.0
        %1022 = vmatpush2.msra.mxu0 0.0
        %1023 = vmatprep.subr.mxu0 0.0
        %1024 = vmatpush2.msra.mxu0 0.0
        %1025 = vmatprep.subr.mxu0 0.0
        %1026 = vmatpush2.msra.mxu0 0.0
        %1027 = vmatprep.subr.mxu0 0.0
        %1028 = vmatpush2.msra.mxu0 0.0
        %1029 = vmatprep.subr.mxu0 0.0
        %1030 = vmatpush2.msra.mxu0 0.0
        %1031 = vmatprep.subr.mxu0 0.0
        %1032 = vmatpush2.msra.mxu0 0.0
        %1033 = vmatprep.subr.mxu0 0.0
        %1034 = vmatpush2.msra.mxu0 0.0
        %1035 = vmatprep.subr.mxu0 0.0
        %1036 = vmatpush2.msra.mxu0 0.0
        %1037 = vmatprep.subr.mxu0 0.0
        %1038 = vmatpush2.msra.mxu0 0.0
        %1039 = vmatprep.subr.mxu0 0.0
        %1040 = vmatpush2.msra.mxu0 0.0
        %1041 = vmatprep.mubr.f32.mxu0 0.0
        %1042 = vmatmul.mubr.f32.gmra.mxu0 %v975
        %v1043 = vpop.f32.mrf.mxu0
        %v1044 = vadd.f32 0.0, %v1043
        %v1045 = vpop.f32.mrf.mxu0
        %1046 = vdwg.mxu0
        %v1047 = vadd.f32 %v806, %v1044
        %1048 = vrot.lane.b32.xlu0 %v325, 104
        %v1049 = vpop.permute.xlu0 %1048
        %1050 = vrot.lane.b32.xlu0 %v322, 72
        %v1051 = vpop.permute.xlu0 %1050
        %v1052 = vsel %vm335, %v1049, 0
        %v1054 = vsel %vm335, %v1051, 0
        %1056 = vmatprep.subr.mxu0 0.0
        %1057 = vmatpush1.xpose.msra.mxu0 0.0
        %1058 = vmatprep.subr.mxu0 0.0
        %1059 = vmatpush1.xpose.msra.mxu0 0.0
        %1060 = vmatprep.subr.mxu0 0.0
        %1061 = vmatpush1.xpose.msra.mxu0 0.0
        %1062 = vmatprep.subr.mxu0 0.0
        %1063 = vmatpush1.xpose.msra.mxu0 0.0
        %1064 = vmatprep.subr.mxu0 0.0
        %1065 = vmatpush1.xpose.msra.mxu0 0.0
        %1066 = vmatprep.subr.mxu0 0.0
        %1067 = vmatpush1.xpose.msra.mxu0 0.0
        %1068 = vmatprep.subr.mxu0 0.0
        %1069 = vmatpush1.xpose.msra.mxu0 0.0
        %1070 = vmatprep.subr.mxu0 0.0
        %1071 = vmatpush1.xpose.msra.mxu0 0.0
        %1072 = vmatprep.subr.mxu0 0.0
        %1073 = vmatpush1.xpose.msra.mxu0 0.0
        %1074 = vmatprep.subr.mxu0 0.0
        %1075 = vmatpush1.xpose.msra.mxu0 0.0
        %1076 = vmatprep.subr.mxu0 0.0
        %1077 = vmatpush1.xpose.msra.mxu0 0.0
        %1078 = vmatprep.subr.mxu0 0.0
        %1079 = vmatpush1.xpose.msra.mxu0 0.0
        %1080 = vmatprep.subr.mxu0 0.0
        %1081 = vmatpush1.xpose.msra.mxu0 0.0
        %1082 = vmatprep.subr.mxu0 0.0
        %1083 = vmatpush1.xpose.msra.mxu0 0.0
        %1084 = vmatprep.subr.mxu0 0.0
        %1085 = vmatpush1.xpose.msra.mxu0 0.0
        %1086 = vmatprep.subr.mxu0 0.0
        %1087 = vmatpush1.xpose.msra.mxu0 %v1054
        %1088 = vmatprep.subr.mxu0 0.0
        %1089 = vmatpush2.xpose.msra.mxu0 0.0
        %1090 = vmatprep.subr.mxu0 0.0
        %1091 = vmatpush2.xpose.msra.mxu0 0.0
        %1092 = vmatprep.subr.mxu0 0.0
        %1093 = vmatpush2.xpose.msra.mxu0 0.0
        %1094 = vmatprep.subr.mxu0 0.0
        %1095 = vmatpush2.xpose.msra.mxu0 0.0
        %1096 = vmatprep.subr.mxu0 0.0
        %1097 = vmatpush2.xpose.msra.mxu0 0.0
        %1098 = vmatprep.subr.mxu0 0.0
        %1099 = vmatpush2.xpose.msra.mxu0 0.0
        %1100 = vmatprep.subr.mxu0 0.0
        %1101 = vmatpush2.xpose.msra.mxu0 0.0
        %1102 = vmatprep.subr.mxu0 0.0
        %1103 = vmatpush2.xpose.msra.mxu0 0.0
        %1104 = vmatprep.subr.mxu0 0.0
        %1105 = vmatpush2.xpose.msra.mxu0 0.0
        %1106 = vmatprep.subr.mxu0 0.0
        %1107 = vmatpush2.xpose.msra.mxu0 0.0
        %1108 = vmatprep.subr.mxu0 0.0
        %1109 = vmatpush2.xpose.msra.mxu0 0.0
        %1110 = vmatprep.subr.mxu0 0.0
        %1111 = vmatpush2.xpose.msra.mxu0 0.0
        %1112 = vmatprep.subr.mxu0 0.0
        %1113 = vmatpush2.xpose.msra.mxu0 0.0
        %1114 = vmatprep.subr.mxu0 0.0
        %1115 = vmatpush2.xpose.msra.mxu0 0.0
        %1116 = vmatprep.subr.mxu0 0.0
        %1117 = vmatpush2.xpose.msra.mxu0 0.0
        %1118 = vmatprep.subr.mxu0 0.0
        %1119 = vmatpush2.xpose.msra.mxu0 0.0
        %1120 = vmatprep.mubr.f32.mxu0 0.0
        %1121 = vmatmul.mubr.f32.gmra.mxu0 %v1052
        %v1122 = vpop.f32.mrf.mxu0
        %v1123 = vadd.f32 %v331, %v1122
        %v1124 = vpop.f32.mrf.mxu0
        %1125 = vdwg.mxu0
        %v1126 = vsel %vm335, %v1123, -inf
        %1127 = vmax.xlane.f32.xlu0 %v1126
        %v1128 = vpop.xlane.xlu0 %1127
        %v1129 = vsub.f32 %v1123, %v1128
        %v1130 = vmul.f32 %v1129, 1.442695
        %v1131 = vpow.pop %v1130
        %v1132 = vsel %vm335, %v1131, 0.0
        %1133 = vadd.xlane.f32.xlu0 %v1132
        %v1134 = vpop.xlane.xlu0 %1133
        %1135 = vrot.lane.b32.xlu0 %v322, 40
        %v1136 = vpop.permute.xlu0 %1135
        %v1139 = vsel %vm335, %v1131, 0
        %1141 = vmatprep.subr.mxu0 0.0
        %1142 = vmatpush1.msra.mxu0 0.0
        %1143 = vmatprep.subr.mxu0 0.0
        %1144 = vmatpush1.msra.mxu0 0.0
        %1145 = vmatprep.subr.mxu0 0.0
        %1146 = vmatpush1.msra.mxu0 0.0
        %1147 = vmatprep.subr.mxu0 0.0
        %1148 = vmatpush1.msra.mxu0 0.0
        %1149 = vmatprep.subr.mxu0 0.0
        %1150 = vmatpush1.msra.mxu0 0.0
        %1151 = vmatprep.subr.mxu0 0.0
        %1152 = vmatpush1.msra.mxu0 0.0
        %1153 = vmatprep.subr.mxu0 0.0
        %1154 = vmatpush1.msra.mxu0 0.0
        %1155 = vmatprep.subr.mxu0 0.0
        %1156 = vmatpush1.msra.mxu0 0.0
        %1157 = vmatprep.subr.mxu0 0.0
        %1158 = vmatpush1.msra.mxu0 0.0
        %1159 = vmatprep.subr.mxu0 0.0
        %1160 = vmatpush1.msra.mxu0 0.0
        %1161 = vmatprep.subr.mxu0 0.0
        %1162 = vmatpush1.msra.mxu0 0.0
        %1163 = vmatprep.subr.mxu0 0.0
        %1164 = vmatpush1.msra.mxu0 0.0
        %1165 = vmatprep.subr.mxu0 0.0
        %1166 = vmatpush1.msra.mxu0 0.0
        %1167 = vmatprep.subr.mxu0 0.0
        %1168 = vmatpush1.msra.mxu0 0.0
        %1169 = vmatprep.subr.mxu0 0.0
        %1170 = vmatpush1.msra.mxu0 0.0
        %1171 = vmatprep.subr.mxu0 0.0
        %1172 = vmatpush1.msra.mxu0 %v1136
        %1173 = vmatprep.subr.mxu0 0.0
        %1174 = vmatpush2.msra.mxu0 0.0
        %1175 = vmatprep.subr.mxu0 0.0
        %1176 = vmatpush2.msra.mxu0 0.0
        %1177 = vmatprep.subr.mxu0 0.0
        %1178 = vmatpush2.msra.mxu0 0.0
        %1179 = vmatprep.subr.mxu0 0.0
        %1180 = vmatpush2.msra.mxu0 0.0
        %1181 = vmatprep.subr.mxu0 0.0
        %1182 = vmatpush2.msra.mxu0 0.0
        %1183 = vmatprep.subr.mxu0 0.0
        %1184 = vmatpush2.msra.mxu0 0.0
        %1185 = vmatprep.subr.mxu0 0.0
        %1186 = vmatpush2.msra.mxu0 0.0
        %1187 = vmatprep.subr.mxu0 0.0
        %1188 = vmatpush2.msra.mxu0 0.0
        %1189 = vmatprep.subr.mxu0 0.0
        %1190 = vmatpush2.msra.mxu0 0.0
        %1191 = vmatprep.subr.mxu0 0.0
        %1192 = vmatpush2.msra.mxu0 0.0
        %1193 = vmatprep.subr.mxu0 0.0
        %1194 = vmatpush2.msra.mxu0 0.0
        %1195 = vmatprep.subr.mxu0 0.0
        %1196 = vmatpush2.msra.mxu0 0.0
        %1197 = vmatprep.subr.mxu0 0.0
        %1198 = vmatpush2.msra.mxu0 0.0
        %1199 = vmatprep.subr.mxu0 0.0
        %1200 = vmatpush2.msra.mxu0 0.0
        %1201 = vmatprep.subr.mxu0 0.0
        %1202 = vmatpush2.msra.mxu0 0.0
        %1203 = vmatprep.subr.mxu0 0.0
        %1204 = vmatpush2.msra.mxu0 0.0
        %1205 = vmatprep.mubr.f32.mxu0 0.0
        %1206 = vmatmul.mubr.f32.gmra.mxu0 %v1139
        %v1207 = vpop.f32.mrf.mxu0
        %v1208 = vadd.f32 0.0, %v1207
        %v1209 = vpop.f32.mrf.mxu0
        %1210 = vdwg.mxu0
        %v1211 = vrcp.pop %v1134
        %v1212 = vmul.f32 %v1208, %v1211
        %v1214 = vsel %vm335, %v1212, 0
        %1216 = vmatprep.subr.mxu0 0.0
        %1217 = vmatpush1.msra.mxu0 0.0
        %1218 = vmatprep.subr.mxu0 0.0
        %1219 = vmatpush1.msra.mxu0 0.0
        %1220 = vmatprep.subr.mxu0 0.0
        %1221 = vmatpush1.msra.mxu0 0.0
        %1222 = vmatprep.subr.mxu0 0.0
        %1223 = vmatpush1.msra.mxu0 0.0
        %1224 = vmatprep.subr.mxu0 0.0
        %1225 = vmatpush1.msra.mxu0 0.0
        %1226 = vmatprep.subr.mxu0 0.0
        %1227 = vmatpush1.msra.mxu0 0.0
        %1228 = vmatprep.subr.mxu0 0.0
        %1229 = vmatpush1.msra.mxu0 0.0
        %1230 = vmatprep.subr.mxu0 0.0
        %1231 = vmatpush1.msra.mxu0 0.0
        %1232 = vmatprep.subr.mxu0 0.0
        %1233 = vmatpush1.msra.mxu0 0.0
        %1234 = vmatprep.subr.mxu0 0.0
        %1235 = vmatpush1.msra.mxu0 0.0
        %1236 = vmatprep.subr.mxu0 0.0
        %1237 = vmatpush1.msra.mxu0 0.0
        %1238 = vmatprep.subr.mxu0 0.0
        %1239 = vmatpush1.msra.mxu0 0.0
        %1240 = vmatprep.subr.mxu0 0.0
        %1241 = vmatpush1.msra.mxu0 0.0
        %1242 = vmatprep.subr.mxu0 0.0
        %1243 = vmatpush1.msra.mxu0 0.0
        %1244 = vmatprep.subr.mxu0 0.0
        %1245 = vmatpush1.msra.mxu0 0.0
        %1246 = vmatprep.subr.mxu0 0.0
        %1247 = vmatpush1.msra.mxu0 %v250
        %1248 = vmatprep.subr.mxu0 0.0
        %1249 = vmatpush2.msra.mxu0 0.0
        %1250 = vmatprep.subr.mxu0 0.0
        %1251 = vmatpush2.msra.mxu0 0.0
        %1252 = vmatprep.subr.mxu0 0.0
        %1253 = vmatpush2.msra.mxu0 0.0
        %1254 = vmatprep.subr.mxu0 0.0
        %1255 = vmatpush2.msra.mxu0 0.0
        %1256 = vmatprep.subr.mxu0 0.0
        %1257 = vmatpush2.msra.mxu0 0.0
        %1258 = vmatprep.subr.mxu0 0.0
        %1259 = vmatpush2.msra.mxu0 0.0
        %1260 = vmatprep.subr.mxu0 0.0
        %1261 = vmatpush2.msra.mxu0 0.0
        %1262 = vmatprep.subr.mxu0 0.0
        %1263 = vmatpush2.msra.mxu0 0.0
        %1264 = vmatprep.subr.mxu0 0.0
        %1265 = vmatpush2.msra.mxu0 0.0
        %1266 = vmatprep.subr.mxu0 0.0
        %1267 = vmatpush2.msra.mxu0 0.0
        %1268 = vmatprep.subr.mxu0 0.0
        %1269 = vmatpush2.msra.mxu0 0.0
        %1270 = vmatprep.subr.mxu0 0.0
        %1271 = vmatpush2.msra.mxu0 0.0
        %1272 = vmatprep.subr.mxu0 0.0
        %1273 = vmatpush2.msra.mxu0 0.0
        %1274 = vmatprep.subr.mxu0 0.0
        %1275 = vmatpush2.msra.mxu0 0.0
        %1276 = vmatprep.subr.mxu0 0.0
        %1277 = vmatpush2.msra.mxu0 0.0
        %1278 = vmatprep.subr.mxu0 0.0
        %1279 = vmatpush2.msra.mxu0 0.0
        %1280 = vmatprep.mubr.f32.mxu0 0.0
        %1281 = vmatmul.mubr.f32.gmra.mxu0 %v1214
        %v1282 = vpop.f32.mrf.mxu0
        %v1283 = vadd.f32 0.0, %v1282
        %v1284 = vpop.f32.mrf.mxu0
        %1285 = vdwg.mxu0
        %v1286 = vadd.f32 %v1047, %v1283
        %v1287 = vld [vmem:[%s3] sm:$0x1]
        %v1289 = vlaneseq
        %v1290 = vshrl.u32 %v1289, 7
        %v1291 = vsub.s32 0, %v1290
        %v1292 = vrot.slane %v1287, %v1291
        %v1294 = vadd.f32 %v1286, %v1292
        %1295 = vst.msk [vmem:[%s241] sm:$0xff] %vm251, %v1294
        %s1296 = sand.u32 %s119, 1
        %s1297 = scalar_lea.sflag [#allocation4], %s1296
        %s1298 = sand.u32 %s119, 1
        %s1299 = smul.addr %s1298, 8
        %s1300 = scalar_lea.vmem [#allocation8], %s1299
        // Predicated region
        $region49: #{tpu_custom_call.1} parent=35 // pred_check
          %p1301 = pneg %p129
        $region50: #{tpu_custom_call.1} parent=35 // pred_check_branch
          %1303 = sbr.rel (%p1301) target = $region52
        $region51: #{tpu_custom_call.1} parent=35 // pred_region
          %s1305 = ssub.s32 128, 128
          %1306 = vsyncadd %s1297, %s1305
          %s1307 = smul.addr %s22, 128
          %s1308 = scalar_lea.hbm %s4, %s1307
          %s1310 = sshll.u32 %s1300, 4
          %s1311 = int_to_ptr.vmem [resolvable:$true] %s1310
          %1313 = dma.vmem_to_hbm [thread:$0]  %s1311, 128, %s1308, %s1297
        $region52: #{tpu_custom_call.1} parent=35 // pred_fallthru
          _
      $region36: #{tpu_custom_call.1} parent=5 // pred_fallthru
        _
      %p1314 = scmp.le.s32.totalorder 2, %s17
      // Predicated region
      $region53: #{tpu_custom_call.1} parent=5 // pred_check
        %p1315 = pneg %p1314
      $region54: #{tpu_custom_call.1} parent=5 // pred_check_branch
        %1317 = sbr.rel (%p1315) target = $region56
      $region55: #{tpu_custom_call.1} parent=5 // pred_region
        %s1318 = ssub.s32 %s17, 2
        // Predicated region
        $region57: #{tpu_custom_call.1} parent=55 // pred_check
          %p1319 = pneg %p135
        $region58: #{tpu_custom_call.1} parent=55 // pred_check_branch
          %1321 = sbr.rel (%p1319) target = $region60
        $region59: #{tpu_custom_call.1} parent=55 // pred_region
          %s1322 = sand.u32 %s120, 1
          %s1323 = scalar_lea.sflag [#allocation4], %s1322
          %s1324 = sand.u32 %s120, 1
          %s1325 = smul.addr %s1324, 8
          %s1326 = scalar_lea.vmem [#allocation8], %s1325
          %1327 = dma.done %s1323, 128
        $region60: #{tpu_custom_call.1} parent=55 // pred_fallthru
          _
      $region56: #{tpu_custom_call.1} parent=5 // pred_fallthru
        _
    $region6: #{tpu_custom_call.1} parent=1 // loop_footer
      %s21 = sadd.s32 1, %s17
    $region7: #{tpu_custom_call.1} parent=1 // loop_footer_branch
      %16 = sbr.rel target = $region3
    $region8: #{tpu_custom_call.1} parent=1 // loop_exit
      _
    %1328 = vsyncpa [#allocation3], 1
    %s1329 = scalar_lea.sflag [#allocation3], 1
    %1330 = vsyncpa %s1329, 1
    %1331 = vsyncpa [#allocation6], 1
    %1332 = vsyncpa [#allocation4], 1
    %s1333 = scalar_lea.sflag [#allocation4], 1
    %1334 = vsyncpa %s1333, 1

</llo_original>
